<compile_context>
chip_gen: v7x
topology: tpu7x:2x2x1
jax: 0.10.0
libtpu: 0.0.40
codegen_flags: <defaults>
</compile_context>

<pallas_src>
import jax
import jax.numpy as jnp
from jax import lax
from jax.experimental import pallas as pl
from jax.experimental.pallas import tpu as pltpu


def _round_up(x, m):
    return (x + m - 1) // m * m


def _make_gru_kernel(t_chunk, seq_len, bb, d_pad, h_pad, needs_mask, unroll):
    """Kernel body for one (batch_block, time_chunk) grid step."""

    def kernel(x_ref,      # (t_chunk, Bb, Dp) bf16  current time chunk (pipelined)
               w_hbm,      # (Dp, 3Hp) bf16  HBM: [W_z | W_r | W_h]
               b_hbm,      # (1, 3Hp)  f32   HBM: [b_z | b_r | b_h]
               uzr_hbm,    # (Hp, 2Hp) bf16  HBM: [U_z | U_r]
               uh_hbm,     # (Hp, Hp)  bf16  HBM: U_h
               h_ref,      # (Bb, Hp)  f32   hidden state (resident output)
               w_vmem, b_vmem, uzr_vmem, uh_vmem,   # VMEM weight scratch
               xw_ref,     # (t_chunk*Bb, 3Hp) f32  precomputed x projections
               copy_sem):  # DMA semaphores (4,)
        chunk = pl.program_id(1)
        n_chunks = pl.num_programs(1)

        @pl.when(chunk == 0)
        def _init():
            # Exactly one resident copy of the weights in VMEM for the pass.
            cps = (pltpu.make_async_copy(w_hbm, w_vmem, copy_sem.at[0]),
                   pltpu.make_async_copy(b_hbm, b_vmem, copy_sem.at[1]),
                   pltpu.make_async_copy(uzr_hbm, uzr_vmem, copy_sem.at[2]),
                   pltpu.make_async_copy(uh_hbm, uh_vmem, copy_sem.at[3]))
            for cp in cps:
                cp.start()
            for cp in cps:
                cp.wait()
            h_ref[...] = jnp.zeros_like(h_ref)

        # ---- hoisted per-chunk input projection: one big MXU matmul --------
        # (t_chunk, Bb, Dp) -> (t_chunk*Bb, Dp): merges leading dims only
        # (Bb is a multiple of 8), so the reshape is copy-free.
        x_all = x_ref[...].reshape(t_chunk * bb, d_pad)
        xw_ref[...] = (jnp.dot(x_all, w_vmem[...],
                               preferred_element_type=jnp.float32)
                       + b_vmem[...])          # bias broadcast hoisted out of loop

        uzr = uzr_vmem[...]
        uh = uh_vmem[...]

        def make_step(masked):
            def step(i, h):
                base = pl.multiple_of(i * bb, bb)
                xw = xw_ref[pl.ds(base, bb), :]                     # (Bb, 3Hp) f32
                hu = jnp.dot(h.astype(uzr.dtype), uzr,
                             preferred_element_type=jnp.float32)    # (Bb, 2Hp)
                z = jax.nn.sigmoid(xw[:, :h_pad] + hu[:, :h_pad])
                r = jax.nn.sigmoid(xw[:, h_pad:2 * h_pad] + hu[:, h_pad:])
                h_tilde = jnp.tanh(
                    xw[:, 2 * h_pad:]
                    + jnp.dot((r * h).astype(uh.dtype), uh,
                              preferred_element_type=jnp.float32))
                h_new = h + z * (h_tilde - h)
                if masked:
                    # Carry h through timesteps that only exist due to padding.
                    t_global = chunk * t_chunk + i
                    h_new = jnp.where(t_global < seq_len, h_new, h)
                return h_new
            return step

        if needs_mask:
            # Only the last time chunk can contain padded steps; every other
            # chunk runs the mask-free body.
            @pl.when(chunk < n_chunks - 1)
            def _body():
                h_ref[...] = lax.fori_loop(0, t_chunk, make_step(False),
                                           h_ref[...], unroll=unroll)

            @pl.when(chunk == n_chunks - 1)
            def _tail():
                h_ref[...] = lax.fori_loop(0, t_chunk, make_step(True),
                                           h_ref[...], unroll=unroll)
        else:
            h_ref[...] = lax.fori_loop(0, t_chunk, make_step(False),
                                       h_ref[...], unroll=unroll)

    return kernel


def gru_forward(inputs, params, *, t_chunk=None):
    """inputs: (batch, seq_len, input_size) f32 -> (batch, hidden) f32."""
    B, T, D = inputs.shape
    H = params["W_z"].shape[1]

    # ---- padded, lane/sublane-aligned layouts ------------------------------
    Bp = _round_up(max(B, 1), 8)      # sublane multiple
    Dp = _round_up(max(D, 1), 128)    # lane multiple
    Hp = _round_up(max(H, 1), 128)    # lane multiple

    if t_chunk is None:
        t_chunk = min(T, 32)          # amortise grid-step cost; M = t_chunk*Bb
    t_chunk = max(1, min(t_chunk, T))
    Tp = _round_up(T, t_chunk)
    needs_mask = Tp != T

    # Split the batch only when each block still gives >= 128 MXU rows per
    # recurrent step; v5e/v6e have a single TensorCore so splitting small
    # batches is pure overhead (halves M, doubles pipeline revolves).
    n_batch_blocks = 2 if (Bp >= 256 and Bp % 16 == 0) else 1
    Bb = Bp // n_batch_blocks

    f32, bf16 = jnp.float32, jnp.bfloat16

    def pad2(a, rows, cols):
        return jnp.pad(a, ((0, rows - a.shape[0]), (0, cols - a.shape[1])))

    # Fused weight layouts.  Zero padding keeps padded lanes of h exactly 0,
    # so padded rows/columns never contaminate real outputs.
    w_zrh = jnp.concatenate(
        [pad2(params["W_z"], Dp, Hp),
         pad2(params["W_r"], Dp, Hp),
         pad2(params["W_h"], Dp, Hp)], axis=1).astype(bf16)      # (Dp, 3Hp)
    b_zrh = jnp.concatenate(
        [pad2(params["b_z"], 1, Hp),
         pad2(params["b_r"], 1, Hp),
         pad2(params["b_h"], 1, Hp)], axis=1).astype(f32)        # (1, 3Hp)
    u_zr = jnp.concatenate(
        [pad2(params["U_z"], Hp, Hp),
         pad2(params["U_r"], Hp, Hp)], axis=1).astype(bf16)      # (Hp, 2Hp)
    u_h = pad2(params["U_h"], Hp, Hp).astype(bf16)               # (Hp, Hp)

    # (B, T, D) -> (Tp, Bp, Dp) time-major bf16 so each chunk block is a clean
    # (t_chunk, 8k, 128k) tile.
    x_tbd = jnp.transpose(inputs, (1, 0, 2))
    x_tbd = jnp.pad(x_tbd, ((0, Tp - T), (0, Bp - B), (0, Dp - D))).astype(bf16)

    unroll = int(max(1, min(8, t_chunk)))
    kernel = _make_gru_kernel(t_chunk, T, Bb, Dp, Hp, needs_mask, unroll)

    # Explicit VMEM budget: single-copy weights, double-buffered x chunk,
    # xw scratch, resident hidden state — plus headroom.
    w_bytes = 2 * (Dp * 3 * Hp + Hp * 2 * Hp + Hp * Hp) + 4 * 3 * Hp
    footprint = (w_bytes
                 + 2 * 2 * t_chunk * Bb * Dp      # bf16 x chunk, double-buffered
                 + 4 * t_chunk * Bb * 3 * Hp      # f32 xw scratch
                 + 2 * 4 * Bb * Hp)               # f32 hidden output
    vmem_limit = int(min(56 * 1024 * 1024, footprint + 8 * 1024 * 1024))

    grid = (n_batch_blocks, Tp // t_chunk)
    grid_spec = pltpu.PrefetchScalarGridSpec(
        num_scalar_prefetch=0,
        grid=grid,
        in_specs=[
            pl.BlockSpec((t_chunk, Bb, Dp), lambda bb_, c: (c, bb_, 0)),
            pl.BlockSpec(memory_space=pl.ANY),   # fused [W_z|W_r|W_h] (HBM)
            pl.BlockSpec(memory_space=pl.ANY),   # fused bias (HBM)
            pl.BlockSpec(memory_space=pl.ANY),   # fused [U_z|U_r] (HBM)
            pl.BlockSpec(memory_space=pl.ANY),   # U_h (HBM)
        ],
        out_specs=pl.BlockSpec((Bb, Hp), lambda bb_, c: (bb_, 0)),
        scratch_shapes=[
            pltpu.VMEM((Dp, 3 * Hp), bf16),
            pltpu.VMEM((1, 3 * Hp), f32),
            pltpu.VMEM((Hp, 2 * Hp), bf16),
            pltpu.VMEM((Hp, Hp), bf16),
            pltpu.VMEM((t_chunk * Bb, 3 * Hp), f32),
            pltpu.SemaphoreType.DMA((4,)),
        ],
    )

    h_pad_out = pl.pallas_call(
        kernel,
        out_shape=jax.ShapeDtypeStruct((Bp, Hp), f32),
        grid_spec=grid_spec,
        compiler_params=pltpu.CompilerParams(
            dimension_semantics=("parallel", "arbitrary"),
            vmem_limit_bytes=vmem_limit),
    )(x_tbd, w_zrh, b_zrh, u_zr, u_h)

    return h_pad_out[:B, :H]


def init_params(key, input_size, hidden_size):
    """Deterministic init mimicking nn.Linear's U(-1/sqrt(fan_in), 1/sqrt(fan_in))."""
    ks = jax.random.split(key, 9)
    kin = 1.0 / jnp.sqrt(jnp.float32(input_size))
    khid = 1.0 / jnp.sqrt(jnp.float32(hidden_size))

    def u(k, shape, bound):
        return jax.random.uniform(k, shape, jnp.float32, -bound, bound)

    return {
        "W_z": u(ks[0], (input_size, hidden_size), kin),
        "b_z": u(ks[1], (1, hidden_size), kin),
        "U_z": u(ks[2], (hidden_size, hidden_size), khid),
        "W_r": u(ks[3], (input_size, hidden_size), kin),
        "b_r": u(ks[4], (1, hidden_size), kin),
        "U_r": u(ks[5], (hidden_size, hidden_size), khid),
        "W_h": u(ks[6], (input_size, hidden_size), kin),
        "b_h": u(ks[7], (1, hidden_size), kin),
        "U_h": u(ks[8], (hidden_size, hidden_size), khid),
    }


def gru_reference(inputs, params):
    """Pure-JAX f32 reference matching the PyTorch module semantics."""
    B, T, D = inputs.shape
    H = params["W_z"].shape[1]
    h = jnp.zeros((B, H), jnp.float32)
    for t in range(T):
        x = inputs[:, t, :]
        z = jax.nn.sigmoid(x @ params["W_z"] + params["b_z"] + h @ params["U_z"])
        r = jax.nn.sigmoid(x @ params["W_r"] + params["b_r"] + h @ params["U_r"])
        h_tilde = jnp.tanh(x @ params["W_h"] + params["b_h"] + (r * h) @ params["U_h"])
        h = (1.0 - z) * h + z * h_tilde
    return h


if __name__ == "__main__":
    batch, seq_len, input_size, hidden_size = 2, 8, 16, 32

    key = jax.random.PRNGKey(0)
    k_in, k_par = jax.random.split(key)
    inputs = jax.random.normal(k_in, (batch, seq_len, input_size), jnp.float32)
    params = init_params(k_par, input_size, hidden_size)

    h_out = jax.block_until_ready(gru_forward(inputs, params))
    h_ref = gru_reference(inputs, params)

    assert h_out.shape == (batch, hidden_size)
    # bf16 weights/inputs on the MXU (f32 accumulation) => relaxed tolerance
    # against the pure-f32 reference.
    max_err = float(jnp.max(jnp.abs(h_out - h_ref)))
    assert jnp.allclose(h_out, h_ref, atol=3e-2, rtol=3e-2), max_err

    print("KERNEL_OK")
</pallas_src>

<mosaic_0001>
module attributes {stable_mosaic.version = 11 : i64} {
  func.func @kernel(%arg0: i32, %arg1: i32, %arg2: memref<8x8x128xbf16, #tpu.memory_space<vmem>>, %arg3: memref<128x384xbf16, #tpu.memory_space<any>>, %arg4: memref<1x384xf32, #tpu.memory_space<any>>, %arg5: memref<128x256xbf16, #tpu.memory_space<any>>, %arg6: memref<128x128xbf16, #tpu.memory_space<any>>, %arg7: memref<8x128xf32, #tpu.memory_space<vmem>>, %arg8: memref<128x384xbf16, #tpu.memory_space<vmem>>, %arg9: memref<1x384xf32, #tpu.memory_space<vmem>>, %arg10: memref<128x256xbf16, #tpu.memory_space<vmem>>, %arg11: memref<128x128xbf16, #tpu.memory_space<vmem>>, %arg12: memref<64x384xf32, #tpu.memory_space<vmem>>, %arg13: memref<4x!tpu.dma_semaphore, #tpu.memory_space<semaphore_mem>>) attributes {dimension_semantics = [#tpu.dimension_semantics<parallel>, #tpu.dimension_semantics<arbitrary>], iteration_bounds = array<i64: 1, 1>, scalar_prefetch = 0 : i64, scratch_operands = 6 : i64, tpu.core_type = #tpu.core_type<tc>, window_params = [{transform_indices = @transform_0, window_bounds = array<i64: 8, 8, 128>}, {}, {}, {}, {}, {transform_indices = @transform_5, window_bounds = array<i64: 8, 128>}]} {
    %c0_i32 = arith.constant 0 : i32
    %0 = arith.cmpi eq, %arg1, %c0_i32 : i32
    %1 = arith.extui %0 : i1 to i32
    %c0_i32_0 = arith.constant 0 : i32
    %2 = arith.cmpi ne, %1, %c0_i32_0 : i32
    scf.if %2 {
      %c0_i32_66 = arith.constant 0 : i32
      %263 = tpu.memref_slice %arg13[%c0_i32_66] : memref<4x!tpu.dma_semaphore, #tpu.memory_space<semaphore_mem>> -> memref<1x!tpu.dma_semaphore, #tpu.memory_space<semaphore_mem>>
      %264 = tpu.memref_squeeze %263 : memref<1x!tpu.dma_semaphore, #tpu.memory_space<semaphore_mem>> -> memref<!tpu.dma_semaphore, #tpu.memory_space<semaphore_mem>>
      tpu.enqueue_dma source(%arg3 : memref<128x384xbf16, #tpu.memory_space<any>>) target(%arg8 : memref<128x384xbf16, #tpu.memory_space<vmem>>) target_semaphore(%264 : memref<!tpu.dma_semaphore, #tpu.memory_space<semaphore_mem>>)
      %c1_i32_67 = arith.constant 1 : i32
      %265 = tpu.memref_slice %arg13[%c1_i32_67] : memref<4x!tpu.dma_semaphore, #tpu.memory_space<semaphore_mem>> -> memref<1x!tpu.dma_semaphore, #tpu.memory_space<semaphore_mem>>
      %266 = tpu.memref_squeeze %265 : memref<1x!tpu.dma_semaphore, #tpu.memory_space<semaphore_mem>> -> memref<!tpu.dma_semaphore, #tpu.memory_space<semaphore_mem>>
      tpu.enqueue_dma source(%arg4 : memref<1x384xf32, #tpu.memory_space<any>>) target(%arg9 : memref<1x384xf32, #tpu.memory_space<vmem>>) target_semaphore(%266 : memref<!tpu.dma_semaphore, #tpu.memory_space<semaphore_mem>>)
      %c2_i32_68 = arith.constant 2 : i32
      %267 = tpu.memref_slice %arg13[%c2_i32_68] : memref<4x!tpu.dma_semaphore, #tpu.memory_space<semaphore_mem>> -> memref<1x!tpu.dma_semaphore, #tpu.memory_space<semaphore_mem>>
      %268 = tpu.memref_squeeze %267 : memref<1x!tpu.dma_semaphore, #tpu.memory_space<semaphore_mem>> -> memref<!tpu.dma_semaphore, #tpu.memory_space<semaphore_mem>>
      tpu.enqueue_dma source(%arg5 : memref<128x256xbf16, #tpu.memory_space<any>>) target(%arg10 : memref<128x256xbf16, #tpu.memory_space<vmem>>) target_semaphore(%268 : memref<!tpu.dma_semaphore, #tpu.memory_space<semaphore_mem>>)
      %c3_i32_69 = arith.constant 3 : i32
      %269 = tpu.memref_slice %arg13[%c3_i32_69] : memref<4x!tpu.dma_semaphore, #tpu.memory_space<semaphore_mem>> -> memref<1x!tpu.dma_semaphore, #tpu.memory_space<semaphore_mem>>
      %270 = tpu.memref_squeeze %269 : memref<1x!tpu.dma_semaphore, #tpu.memory_space<semaphore_mem>> -> memref<!tpu.dma_semaphore, #tpu.memory_space<semaphore_mem>>
      tpu.enqueue_dma source(%arg6 : memref<128x128xbf16, #tpu.memory_space<any>>) target(%arg11 : memref<128x128xbf16, #tpu.memory_space<vmem>>) target_semaphore(%270 : memref<!tpu.dma_semaphore, #tpu.memory_space<semaphore_mem>>)
      %c0_i32_70 = arith.constant 0 : i32
      %271 = tpu.memref_slice %arg13[%c0_i32_70] : memref<4x!tpu.dma_semaphore, #tpu.memory_space<semaphore_mem>> -> memref<1x!tpu.dma_semaphore, #tpu.memory_space<semaphore_mem>>
      %272 = tpu.memref_squeeze %271 : memref<1x!tpu.dma_semaphore, #tpu.memory_space<semaphore_mem>> -> memref<!tpu.dma_semaphore, #tpu.memory_space<semaphore_mem>>
      tpu.wait_dma2 semaphore(%272 : memref<!tpu.dma_semaphore, #tpu.memory_space<semaphore_mem>>) src(%arg3 : memref<128x384xbf16, #tpu.memory_space<any>>) dst(%arg8 : memref<128x384xbf16, #tpu.memory_space<vmem>>)
      %c1_i32_71 = arith.constant 1 : i32
      %273 = tpu.memref_slice %arg13[%c1_i32_71] : memref<4x!tpu.dma_semaphore, #tpu.memory_space<semaphore_mem>> -> memref<1x!tpu.dma_semaphore, #tpu.memory_space<semaphore_mem>>
      %274 = tpu.memref_squeeze %273 : memref<1x!tpu.dma_semaphore, #tpu.memory_space<semaphore_mem>> -> memref<!tpu.dma_semaphore, #tpu.memory_space<semaphore_mem>>
      tpu.wait_dma2 semaphore(%274 : memref<!tpu.dma_semaphore, #tpu.memory_space<semaphore_mem>>) src(%arg4 : memref<1x384xf32, #tpu.memory_space<any>>) dst(%arg9 : memref<1x384xf32, #tpu.memory_space<vmem>>)
      %c2_i32_72 = arith.constant 2 : i32
      %275 = tpu.memref_slice %arg13[%c2_i32_72] : memref<4x!tpu.dma_semaphore, #tpu.memory_space<semaphore_mem>> -> memref<1x!tpu.dma_semaphore, #tpu.memory_space<semaphore_mem>>
      %276 = tpu.memref_squeeze %275 : memref<1x!tpu.dma_semaphore, #tpu.memory_space<semaphore_mem>> -> memref<!tpu.dma_semaphore, #tpu.memory_space<semaphore_mem>>
      tpu.wait_dma2 semaphore(%276 : memref<!tpu.dma_semaphore, #tpu.memory_space<semaphore_mem>>) src(%arg5 : memref<128x256xbf16, #tpu.memory_space<any>>) dst(%arg10 : memref<128x256xbf16, #tpu.memory_space<vmem>>)
      %c3_i32_73 = arith.constant 3 : i32
      %277 = tpu.memref_slice %arg13[%c3_i32_73] : memref<4x!tpu.dma_semaphore, #tpu.memory_space<semaphore_mem>> -> memref<1x!tpu.dma_semaphore, #tpu.memory_space<semaphore_mem>>
      %278 = tpu.memref_squeeze %277 : memref<1x!tpu.dma_semaphore, #tpu.memory_space<semaphore_mem>> -> memref<!tpu.dma_semaphore, #tpu.memory_space<semaphore_mem>>
      tpu.wait_dma2 semaphore(%278 : memref<!tpu.dma_semaphore, #tpu.memory_space<semaphore_mem>>) src(%arg6 : memref<128x128xbf16, #tpu.memory_space<any>>) dst(%arg11 : memref<128x128xbf16, #tpu.memory_space<vmem>>)
      %cst_74 = arith.constant 0.000000e+00 : f32
      %279 = vector.broadcast %cst_74 : f32 to vector<8x128xf32>
      %c0_75 = arith.constant 0 : index
      %c0_76 = arith.constant 0 : index
      %280 = vector.load %arg7[%c0_75, %c0_76] : memref<8x128xf32, #tpu.memory_space<vmem>>, vector<8x128xf32>
      tpu.vector_store %arg7[%c0_75, %c0_76], %279 {strides = array<i32>} : memref<8x128xf32, #tpu.memory_space<vmem>>, vector<8x128xf32>,
    } else {
    }
    %c0 = arith.constant 0 : index
    %c0_1 = arith.constant 0 : index
    %c0_2 = arith.constant 0 : index
    %3 = vector.load %arg2[%c0, %c0_1, %c0_2] : memref<8x8x128xbf16, #tpu.memory_space<vmem>>, vector<8x8x128xbf16>
    %4 = vector.shape_cast %3 : vector<8x8x128xbf16> to vector<64x128xbf16>
    %c0_3 = arith.constant 0 : index
    %c0_4 = arith.constant 0 : index
    %5 = vector.load %arg8[%c0_3, %c0_4] : memref<128x384xbf16, #tpu.memory_space<vmem>>, vector<128x384xbf16>
    %cst = arith.constant dense<0.000000e+00> : vector<64x384xf32>
    %6 = tpu.matmul %4, %5, %cst {dimension_numbers = #tpu.dot_dimension_numbers<[1], [0], [0], [1], [0, 0, 1, 1], [], []>} : vector<64x128xbf16>, vector<128x384xbf16>, vector<64x384xf32> -> vector<64x384xf32>
    %c0_5 = arith.constant 0 : index
    %c0_6 = arith.constant 0 : index
    %7 = vector.load %arg9[%c0_5, %c0_6] : memref<1x384xf32, #tpu.memory_space<vmem>>, vector<1x384xf32>
    %8 = vector.broadcast %7 : vector<1x384xf32> to vector<64x384xf32>
    %9 = arith.addf %6, %8 : vector<64x384xf32>
    %c0_7 = arith.constant 0 : index
    %c0_8 = arith.constant 0 : index
    %10 = vector.load %arg12[%c0_7, %c0_8] : memref<64x384xf32, #tpu.memory_space<vmem>>, vector<64x384xf32>
    tpu.vector_store %arg12[%c0_7, %c0_8], %9 {strides = array<i32>} : memref<64x384xf32, #tpu.memory_space<vmem>>, vector<64x384xf32>,
    %c0_9 = arith.constant 0 : index
    %c0_10 = arith.constant 0 : index
    %11 = vector.load %arg10[%c0_9, %c0_10] : memref<128x256xbf16, #tpu.memory_space<vmem>>, vector<128x256xbf16>
    %c0_11 = arith.constant 0 : index
    %c0_12 = arith.constant 0 : index
    %12 = vector.load %arg11[%c0_11, %c0_12] : memref<128x128xbf16, #tpu.memory_space<vmem>>, vector<128x128xbf16>
    %c0_13 = arith.constant 0 : index
    %c0_14 = arith.constant 0 : index
    %13 = vector.load %arg7[%c0_13, %c0_14] : memref<8x128xf32, #tpu.memory_space<vmem>>, vector<8x128xf32>
    %c0_i32_15 = arith.constant 0 : i32
    %c8_i32 = arith.constant 8 : i32
    %14 = arith.muli %c0_i32_15, %c8_i32 : i32
    %15 = tpu.assume_multiple %14, 8 : i32
    %16 = arith.index_cast %15 : i32 to index
    %c0_16 = arith.constant 0 : index
    %17 = vector.load %arg12[%16, %c0_16] : memref<64x384xf32, #tpu.memory_space<vmem>>, vector<8x384xf32>
    %18 = arith.truncf %13 : vector<8x128xf32> to vector<8x128xbf16>
    %cst_17 = arith.constant dense<0.000000e+00> : vector<8x256xf32>
    %19 = tpu.matmul %18, %11, %cst_17 {dimension_numbers = #tpu.dot_dimension_numbers<[1], [0], [0], [1], [0, 0, 1, 1], [], []>} : vector<8x128xbf16>, vector<128x256xbf16>, vector<8x256xf32> -> vector<8x256xf32>
    %20 = vector.extract_strided_slice %17 {offsets = [0, 0], sizes = [8, 128], strides = [1, 1]} : vector<8x384xf32> to vector<8x128xf32>
    %21 = vector.extract_strided_slice %19 {offsets = [0, 0], sizes = [8, 128], strides = [1, 1]} : vector<8x256xf32> to vector<8x128xf32>
    %22 = arith.addf %20, %21 : vector<8x128xf32>
    %23 = arith.negf %22 : vector<8x128xf32>
    %24 = math.exp %23 : vector<8x128xf32>
    %cst_18 = arith.constant 1.000000e+00 : f32
    %25 = vector.broadcast %cst_18 : f32 to vector<8x128xf32>
    %26 = arith.addf %25, %24 : vector<8x128xf32>
    %27 = arith.divf %25, %26 : vector<8x128xf32>
    %28 = vector.extract_strided_slice %17 {offsets = [0, 128], sizes = [8, 128], strides = [1, 1]} : vector<8x384xf32> to vector<8x128xf32>
    %29 = vector.extract_strided_slice %19 {offsets = [0, 128], sizes = [8, 128], strides = [1, 1]} : vector<8x256xf32> to vector<8x128xf32>
    %30 = arith.addf %28, %29 : vector<8x128xf32>
    %31 = arith.negf %30 : vector<8x128xf32>
    %32 = math.exp %31 : vector<8x128xf32>
    %cst_19 = arith.constant 1.000000e+00 : f32
    %33 = vector.broadcast %cst_19 : f32 to vector<8x128xf32>
    %34 = arith.addf %33, %32 : vector<8x128xf32>
    %35 = arith.divf %33, %34 : vector<8x128xf32>
    %36 = vector.extract_strided_slice %17 {offsets = [0, 256], sizes = [8, 128], strides = [1, 1]} : vector<8x384xf32> to vector<8x128xf32>
    %37 = arith.mulf %35, %13 : vector<8x128xf32>
    %38 = arith.truncf %37 : vector<8x128xf32> to vector<8x128xbf16>
    %cst_20 = arith.constant dense<0.000000e+00> : vector<8x128xf32>
    %39 = tpu.matmul %38, %12, %cst_20 {dimension_numbers = #tpu.dot_dimension_numbers<[1], [0], [0], [1], [0, 0, 1, 1], [], []>} : vector<8x128xbf16>, vector<128x128xbf16>, vector<8x128xf32> -> vector<8x128xf32>
    %40 = arith.addf %36, %39 : vector<8x128xf32>
    %41 = math.tanh %40 : vector<8x128xf32>
    %42 = arith.subf %41, %13 : vector<8x128xf32>
    %43 = arith.mulf %27, %42 : vector<8x128xf32>
    %44 = arith.addf %13, %43 : vector<8x128xf32>
    %c1_i32 = arith.constant 1 : i32
    %c8_i32_21 = arith.constant 8 : i32
    %45 = arith.muli %c1_i32, %c8_i32_21 : i32
    %46 = tpu.assume_multiple %45, 8 : i32
    %47 = arith.index_cast %46 : i32 to index
    %c0_22 = arith.constant 0 : index
    %48 = vector.load %arg12[%47, %c0_22] : memref<64x384xf32, #tpu.memory_space<vmem>>, vector<8x384xf32>
    %49 = arith.truncf %44 : vector<8x128xf32> to vector<8x128xbf16>
    %cst_23 = arith.constant dense<0.000000e+00> : vector<8x256xf32>
    %50 = tpu.matmul %49, %11, %cst_23 {dimension_numbers = #tpu.dot_dimension_numbers<[1], [0], [0], [1], [0, 0, 1, 1], [], []>} : vector<8x128xbf16>, vector<128x256xbf16>, vector<8x256xf32> -> vector<8x256xf32>
    %51 = vector.extract_strided_slice %48 {offsets = [0, 0], sizes = [8, 128], strides = [1, 1]} : vector<8x384xf32> to vector<8x128xf32>
    %52 = vector.extract_strided_slice %50 {offsets = [0, 0], sizes = [8, 128], strides = [1, 1]} : vector<8x256xf32> to vector<8x128xf32>
    %53 = arith.addf %51, %52 : vector<8x128xf32>
    %54 = arith.negf %53 : vector<8x128xf32>
    %55 = math.exp %54 : vector<8x128xf32>
    %cst_24 = arith.constant 1.000000e+00 : f32
    %56 = vector.broadcast %cst_24 : f32 to vector<8x128xf32>
    %57 = arith.addf %56, %55 : vector<8x128xf32>
    %58 = arith.divf %56, %57 : vector<8x128xf32>
    %59 = vector.extract_strided_slice %48 {offsets = [0, 128], sizes = [8, 128], strides = [1, 1]} : vector<8x384xf32> to vector<8x128xf32>
    %60 = vector.extract_strided_slice %50 {offsets = [0, 128], sizes = [8, 128], strides = [1, 1]} : vector<8x256xf32> to vector<8x128xf32>
    %61 = arith.addf %59, %60 : vector<8x128xf32>
    %62 = arith.negf %61 : vector<8x128xf32>
    %63 = math.exp %62 : vector<8x128xf32>
    %cst_25 = arith.constant 1.000000e+00 : f32
    %64 = vector.broadcast %cst_25 : f32 to vector<8x128xf32>
    %65 = arith.addf %64, %63 : vector<8x128xf32>
    %66 = arith.divf %64, %65 : vector<8x128xf32>
    %67 = vector.extract_strided_slice %48 {offsets = [0, 256], sizes = [8, 128], strides = [1, 1]} : vector<8x384xf32> to vector<8x128xf32>
    %68 = arith.mulf %66, %44 : vector<8x128xf32>
    %69 = arith.truncf %68 : vector<8x128xf32> to vector<8x128xbf16>
    %cst_26 = arith.constant dense<0.000000e+00> : vector<8x128xf32>
    %70 = tpu.matmul %69, %12, %cst_26 {dimension_numbers = #tpu.dot_dimension_numbers<[1], [0], [0], [1], [0, 0, 1, 1], [], []>} : vector<8x128xbf16>, vector<128x128xbf16>, vector<8x128xf32> -> vector<8x128xf32>
    %71 = arith.addf %67, %70 : vector<8x128xf32>
    %72 = math.tanh %71 : vector<8x128xf32>
    %73 = arith.subf %72, %44 : vector<8x128xf32>
    %74 = arith.mulf %58, %73 : vector<8x128xf32>
    %75 = arith.addf %44, %74 : vector<8x128xf32>
    %c2_i32 = arith.constant 2 : i32
    %c8_i32_27 = arith.constant 8 : i32
    %76 = arith.muli %c2_i32, %c8_i32_27 : i32
    %77 = tpu.assume_multiple %76, 8 : i32
    %78 = arith.index_cast %77 : i32 to index
    %c0_28 = arith.constant 0 : index
    %79 = vector.load %arg12[%78, %c0_28] : memref<64x384xf32, #tpu.memory_space<vmem>>, vector<8x384xf32>
    %80 = arith.truncf %75 : vector<8x128xf32> to vector<8x128xbf16>
    %cst_29 = arith.constant dense<0.000000e+00> : vector<8x256xf32>
    %81 = tpu.matmul %80, %11, %cst_29 {dimension_numbers = #tpu.dot_dimension_numbers<[1], [0], [0], [1], [0, 0, 1, 1], [], []>} : vector<8x128xbf16>, vector<128x256xbf16>, vector<8x256xf32> -> vector<8x256xf32>
    %82 = vector.extract_strided_slice %79 {offsets = [0, 0], sizes = [8, 128], strides = [1, 1]} : vector<8x384xf32> to vector<8x128xf32>
    %83 = vector.extract_strided_slice %81 {offsets = [0, 0], sizes = [8, 128], strides = [1, 1]} : vector<8x256xf32> to vector<8x128xf32>
    %84 = arith.addf %82, %83 : vector<8x128xf32>
    %85 = arith.negf %84 : vector<8x128xf32>
    %86 = math.exp %85 : vector<8x128xf32>
    %cst_30 = arith.constant 1.000000e+00 : f32
    %87 = vector.broadcast %cst_30 : f32 to vector<8x128xf32>
    %88 = arith.addf %87, %86 : vector<8x128xf32>
    %89 = arith.divf %87, %88 : vector<8x128xf32>
    %90 = vector.extract_strided_slice %79 {offsets = [0, 128], sizes = [8, 128], strides = [1, 1]} : vector<8x384xf32> to vector<8x128xf32>
    %91 = vector.extract_strided_slice %81 {offsets = [0, 128], sizes = [8, 128], strides = [1, 1]} : vector<8x256xf32> to vector<8x128xf32>
    %92 = arith.addf %90, %91 : vector<8x128xf32>
    %93 = arith.negf %92 : vector<8x128xf32>
    %94 = math.exp %93 : vector<8x128xf32>
    %cst_31 = arith.constant 1.000000e+00 : f32
    %95 = vector.broadcast %cst_31 : f32 to vector<8x128xf32>
    %96 = arith.addf %95, %94 : vector<8x128xf32>
    %97 = arith.divf %95, %96 : vector<8x128xf32>
    %98 = vector.extract_strided_slice %79 {offsets = [0, 256], sizes = [8, 128], strides = [1, 1]} : vector<8x384xf32> to vector<8x128xf32>
    %99 = arith.mulf %97, %75 : vector<8x128xf32>
    %100 = arith.truncf %99 : vector<8x128xf32> to vector<8x128xbf16>
    %cst_32 = arith.constant dense<0.000000e+00> : vector<8x128xf32>
    %101 = tpu.matmul %100, %12, %cst_32 {dimension_numbers = #tpu.dot_dimension_numbers<[1], [0], [0], [1], [0, 0, 1, 1], [], []>} : vector<8x128xbf16>, vector<128x128xbf16>, vector<8x128xf32> -> vector<8x128xf32>
    %102 = arith.addf %98, %101 : vector<8x128xf32>
    %103 = math.tanh %102 : vector<8x128xf32>
    %104 = arith.subf %103, %75 : vector<8x128xf32>
    %105 = arith.mulf %89, %104 : vector<8x128xf32>
    %106 = arith.addf %75, %105 : vector<8x128xf32>
    %c3_i32 = arith.constant 3 : i32
    %c8_i32_33 = arith.constant 8 : i32
    %107 = arith.muli %c3_i32, %c8_i32_33 : i32
    %108 = tpu.assume_multiple %107, 8 : i32
    %109 = arith.index_cast %108 : i32 to index
    %c0_34 = arith.constant 0 : index
    %110 = vector.load %arg12[%109, %c0_34] : memref<64x384xf32, #tpu.memory_space<vmem>>, vector<8x384xf32>
    %111 = arith.truncf %106 : vector<8x128xf32> to vector<8x128xbf16>
    %cst_35 = arith.constant dense<0.000000e+00> : vector<8x256xf32>
    %112 = tpu.matmul %111, %11, %cst_35 {dimension_numbers = #tpu.dot_dimension_numbers<[1], [0], [0], [1], [0, 0, 1, 1], [], []>} : vector<8x128xbf16>, vector<128x256xbf16>, vector<8x256xf32> -> vector<8x256xf32>
    %113 = vector.extract_strided_slice %110 {offsets = [0, 0], sizes = [8, 128], strides = [1, 1]} : vector<8x384xf32> to vector<8x128xf32>
    %114 = vector.extract_strided_slice %112 {offsets = [0, 0], sizes = [8, 128], strides = [1, 1]} : vector<8x256xf32> to vector<8x128xf32>
    %115 = arith.addf %113, %114 : vector<8x128xf32>
    %116 = arith.negf %115 : vector<8x128xf32>
    %117 = math.exp %116 : vector<8x128xf32>
    %cst_36 = arith.constant 1.000000e+00 : f32
    %118 = vector.broadcast %cst_36 : f32 to vector<8x128xf32>
    %119 = arith.addf %118, %117 : vector<8x128xf32>
    %120 = arith.divf %118, %119 : vector<8x128xf32>
    %121 = vector.extract_strided_slice %110 {offsets = [0, 128], sizes = [8, 128], strides = [1, 1]} : vector<8x384xf32> to vector<8x128xf32>
    %122 = vector.extract_strided_slice %112 {offsets = [0, 128], sizes = [8, 128], strides = [1, 1]} : vector<8x256xf32> to vector<8x128xf32>
    %123 = arith.addf %121, %122 : vector<8x128xf32>
    %124 = arith.negf %123 : vector<8x128xf32>
    %125 = math.exp %124 : vector<8x128xf32>
    %cst_37 = arith.constant 1.000000e+00 : f32
    %126 = vector.broadcast %cst_37 : f32 to vector<8x128xf32>
    %127 = arith.addf %126, %125 : vector<8x128xf32>
    %128 = arith.divf %126, %127 : vector<8x128xf32>
    %129 = vector.extract_strided_slice %110 {offsets = [0, 256], sizes = [8, 128], strides = [1, 1]} : vector<8x384xf32> to vector<8x128xf32>
    %130 = arith.mulf %128, %106 : vector<8x128xf32>
    %131 = arith.truncf %130 : vector<8x128xf32> to vector<8x128xbf16>
    %cst_38 = arith.constant dense<0.000000e+00> : vector<8x128xf32>
    %132 = tpu.matmul %131, %12, %cst_38 {dimension_numbers = #tpu.dot_dimension_numbers<[1], [0], [0], [1], [0, 0, 1, 1], [], []>} : vector<8x128xbf16>, vector<128x128xbf16>, vector<8x128xf32> -> vector<8x128xf32>
    %133 = arith.addf %129, %132 : vector<8x128xf32>
    %134 = math.tanh %133 : vector<8x128xf32>
    %135 = arith.subf %134, %106 : vector<8x128xf32>
    %136 = arith.mulf %120, %135 : vector<8x128xf32>
    %137 = arith.addf %106, %136 : vector<8x128xf32>
    %c4_i32 = arith.constant 4 : i32
    %c8_i32_39 = arith.constant 8 : i32
    %138 = arith.muli %c4_i32, %c8_i32_39 : i32
    %139 = tpu.assume_multiple %138, 8 : i32
    %140 = arith.index_cast %139 : i32 to index
    %c0_40 = arith.constant 0 : index
    %141 = vector.load %arg12[%140, %c0_40] : memref<64x384xf32, #tpu.memory_space<vmem>>, vector<8x384xf32>
    %142 = arith.truncf %137 : vector<8x128xf32> to vector<8x128xbf16>
    %cst_41 = arith.constant dense<0.000000e+00> : vector<8x256xf32>
    %143 = tpu.matmul %142, %11, %cst_41 {dimension_numbers = #tpu.dot_dimension_numbers<[1], [0], [0], [1], [0, 0, 1, 1], [], []>} : vector<8x128xbf16>, vector<128x256xbf16>, vector<8x256xf32> -> vector<8x256xf32>
    %144 = vector.extract_strided_slice %141 {offsets = [0, 0], sizes = [8, 128], strides = [1, 1]} : vector<8x384xf32> to vector<8x128xf32>
    %145 = vector.extract_strided_slice %143 {offsets = [0, 0], sizes = [8, 128], strides = [1, 1]} : vector<8x256xf32> to vector<8x128xf32>
    %146 = arith.addf %144, %145 : vector<8x128xf32>
    %147 = arith.negf %146 : vector<8x128xf32>
    %148 = math.exp %147 : vector<8x128xf32>
    %cst_42 = arith.constant 1.000000e+00 : f32
    %149 = vector.broadcast %cst_42 : f32 to vector<8x128xf32>
    %150 = arith.addf %149, %148 : vector<8x128xf32>
    %151 = arith.divf %149, %150 : vector<8x128xf32>
    %152 = vector.extract_strided_slice %141 {offsets = [0, 128], sizes = [8, 128], strides = [1, 1]} : vector<8x384xf32> to vector<8x128xf32>
    %153 = vector.extract_strided_slice %143 {offsets = [0, 128], sizes = [8, 128], strides = [1, 1]} : vector<8x256xf32> to vector<8x128xf32>
    %154 = arith.addf %152, %153 : vector<8x128xf32>
    %155 = arith.negf %154 : vector<8x128xf32>
    %156 = math.exp %155 : vector<8x128xf32>
    %cst_43 = arith.constant 1.000000e+00 : f32
    %157 = vector.broadcast %cst_43 : f32 to vector<8x128xf32>
    %158 = arith.addf %157, %156 : vector<8x128xf32>
    %159 = arith.divf %157, %158 : vector<8x128xf32>
    %160 = vector.extract_strided_slice %141 {offsets = [0, 256], sizes = [8, 128], strides = [1, 1]} : vector<8x384xf32> to vector<8x128xf32>
    %161 = arith.mulf %159, %137 : vector<8x128xf32>
    %162 = arith.truncf %161 : vector<8x128xf32> to vector<8x128xbf16>
    %cst_44 = arith.constant dense<0.000000e+00> : vector<8x128xf32>
    %163 = tpu.matmul %162, %12, %cst_44 {dimension_numbers = #tpu.dot_dimension_numbers<[1], [0], [0], [1], [0, 0, 1, 1], [], []>} : vector<8x128xbf16>, vector<128x128xbf16>, vector<8x128xf32> -> vector<8x128xf32>
    %164 = arith.addf %160, %163 : vector<8x128xf32>
    %165 = math.tanh %164 : vector<8x128xf32>
    %166 = arith.subf %165, %137 : vector<8x128xf32>
    %167 = arith.mulf %151, %166 : vector<8x128xf32>
    %168 = arith.addf %137, %167 : vector<8x128xf32>
    %c5_i32 = arith.constant 5 : i32
    %c8_i32_45 = arith.constant 8 : i32
    %169 = arith.muli %c5_i32, %c8_i32_45 : i32
    %170 = tpu.assume_multiple %169, 8 : i32
    %171 = arith.index_cast %170 : i32 to index
    %c0_46 = arith.constant 0 : index
    %172 = vector.load %arg12[%171, %c0_46] : memref<64x384xf32, #tpu.memory_space<vmem>>, vector<8x384xf32>
    %173 = arith.truncf %168 : vector<8x128xf32> to vector<8x128xbf16>
    %cst_47 = arith.constant dense<0.000000e+00> : vector<8x256xf32>
    %174 = tpu.matmul %173, %11, %cst_47 {dimension_numbers = #tpu.dot_dimension_numbers<[1], [0], [0], [1], [0, 0, 1, 1], [], []>} : vector<8x128xbf16>, vector<128x256xbf16>, vector<8x256xf32> -> vector<8x256xf32>
    %175 = vector.extract_strided_slice %172 {offsets = [0, 0], sizes = [8, 128], strides = [1, 1]} : vector<8x384xf32> to vector<8x128xf32>
    %176 = vector.extract_strided_slice %174 {offsets = [0, 0], sizes = [8, 128], strides = [1, 1]} : vector<8x256xf32> to vector<8x128xf32>
    %177 = arith.addf %175, %176 : vector<8x128xf32>
    %178 = arith.negf %177 : vector<8x128xf32>
    %179 = math.exp %178 : vector<8x128xf32>
    %cst_48 = arith.constant 1.000000e+00 : f32
    %180 = vector.broadcast %cst_48 : f32 to vector<8x128xf32>
    %181 = arith.addf %180, %179 : vector<8x128xf32>
    %182 = arith.divf %180, %181 : vector<8x128xf32>
    %183 = vector.extract_strided_slice %172 {offsets = [0, 128], sizes = [8, 128], strides = [1, 1]} : vector<8x384xf32> to vector<8x128xf32>
    %184 = vector.extract_strided_slice %174 {offsets = [0, 128], sizes = [8, 128], strides = [1, 1]} : vector<8x256xf32> to vector<8x128xf32>
    %185 = arith.addf %183, %184 : vector<8x128xf32>
    %186 = arith.negf %185 : vector<8x128xf32>
    %187 = math.exp %186 : vector<8x128xf32>
    %cst_49 = arith.constant 1.000000e+00 : f32
    %188 = vector.broadcast %cst_49 : f32 to vector<8x128xf32>
    %189 = arith.addf %188, %187 : vector<8x128xf32>
    %190 = arith.divf %188, %189 : vector<8x128xf32>
    %191 = vector.extract_strided_slice %172 {offsets = [0, 256], sizes = [8, 128], strides = [1, 1]} : vector<8x384xf32> to vector<8x128xf32>
    %192 = arith.mulf %190, %168 : vector<8x128xf32>
    %193 = arith.truncf %192 : vector<8x128xf32> to vector<8x128xbf16>
    %cst_50 = arith.constant dense<0.000000e+00> : vector<8x128xf32>
    %194 = tpu.matmul %193, %12, %cst_50 {dimension_numbers = #tpu.dot_dimension_numbers<[1], [0], [0], [1], [0, 0, 1, 1], [], []>} : vector<8x128xbf16>, vector<128x128xbf16>, vector<8x128xf32> -> vector<8x128xf32>
    %195 = arith.addf %191, %194 : vector<8x128xf32>
    %196 = math.tanh %195 : vector<8x128xf32>
    %197 = arith.subf %196, %168 : vector<8x128xf32>
    %198 = arith.mulf %182, %197 : vector<8x128xf32>
    %199 = arith.addf %168, %198 : vector<8x128xf32>
    %c6_i32 = arith.constant 6 : i32
    %c8_i32_51 = arith.constant 8 : i32
    %200 = arith.muli %c6_i32, %c8_i32_51 : i32
    %201 = tpu.assume_multiple %200, 8 : i32
    %202 = arith.index_cast %201 : i32 to index
    %c0_52 = arith.constant 0 : index
    %203 = vector.load %arg12[%202, %c0_52] : memref<64x384xf32, #tpu.memory_space<vmem>>, vector<8x384xf32>
    %204 = arith.truncf %199 : vector<8x128xf32> to vector<8x128xbf16>
    %cst_53 = arith.constant dense<0.000000e+00> : vector<8x256xf32>
    %205 = tpu.matmul %204, %11, %cst_53 {dimension_numbers = #tpu.dot_dimension_numbers<[1], [0], [0], [1], [0, 0, 1, 1], [], []>} : vector<8x128xbf16>, vector<128x256xbf16>, vector<8x256xf32> -> vector<8x256xf32>
    %206 = vector.extract_strided_slice %203 {offsets = [0, 0], sizes = [8, 128], strides = [1, 1]} : vector<8x384xf32> to vector<8x128xf32>
    %207 = vector.extract_strided_slice %205 {offsets = [0, 0], sizes = [8, 128], strides = [1, 1]} : vector<8x256xf32> to vector<8x128xf32>
    %208 = arith.addf %206, %207 : vector<8x128xf32>
    %209 = arith.negf %208 : vector<8x128xf32>
    %210 = math.exp %209 : vector<8x128xf32>
    %cst_54 = arith.constant 1.000000e+00 : f32
    %211 = vector.broadcast %cst_54 : f32 to vector<8x128xf32>
    %212 = arith.addf %211, %210 : vector<8x128xf32>
    %213 = arith.divf %211, %212 : vector<8x128xf32>
    %214 = vector.extract_strided_slice %203 {offsets = [0, 128], sizes = [8, 128], strides = [1, 1]} : vector<8x384xf32> to vector<8x128xf32>
    %215 = vector.extract_strided_slice %205 {offsets = [0, 128], sizes = [8, 128], strides = [1, 1]} : vector<8x256xf32> to vector<8x128xf32>
    %216 = arith.addf %214, %215 : vector<8x128xf32>
    %217 = arith.negf %216 : vector<8x128xf32>
    %218 = math.exp %217 : vector<8x128xf32>
    %cst_55 = arith.constant 1.000000e+00 : f32
    %219 = vector.broadcast %cst_55 : f32 to vector<8x128xf32>
    %220 = arith.addf %219, %218 : vector<8x128xf32>
    %221 = arith.divf %219, %220 : vector<8x128xf32>
    %222 = vector.extract_strided_slice %203 {offsets = [0, 256], sizes = [8, 128], strides = [1, 1]} : vector<8x384xf32> to vector<8x128xf32>
    %223 = arith.mulf %221, %199 : vector<8x128xf32>
    %224 = arith.truncf %223 : vector<8x128xf32> to vector<8x128xbf16>
    %cst_56 = arith.constant dense<0.000000e+00> : vector<8x128xf32>
    %225 = tpu.matmul %224, %12, %cst_56 {dimension_numbers = #tpu.dot_dimension_numbers<[1], [0], [0], [1], [0, 0, 1, 1], [], []>} : vector<8x128xbf16>, vector<128x128xbf16>, vector<8x128xf32> -> vector<8x128xf32>
    %226 = arith.addf %222, %225 : vector<8x128xf32>
    %227 = math.tanh %226 : vector<8x128xf32>
    %228 = arith.subf %227, %199 : vector<8x128xf32>
    %229 = arith.mulf %213, %228 : vector<8x128xf32>
    %230 = arith.addf %199, %229 : vector<8x128xf32>
    %c7_i32 = arith.constant 7 : i32
    %c8_i32_57 = arith.constant 8 : i32
    %231 = arith.muli %c7_i32, %c8_i32_57 : i32
    %232 = tpu.assume_multiple %231, 8 : i32
    %233 = arith.index_cast %232 : i32 to index
    %c0_58 = arith.constant 0 : index
    %234 = vector.load %arg12[%233, %c0_58] : memref<64x384xf32, #tpu.memory_space<vmem>>, vector<8x384xf32>
    %235 = arith.truncf %230 : vector<8x128xf32> to vector<8x128xbf16>
    %cst_59 = arith.constant dense<0.000000e+00> : vector<8x256xf32>
    %236 = tpu.matmul %235, %11, %cst_59 {dimension_numbers = #tpu.dot_dimension_numbers<[1], [0], [0], [1], [0, 0, 1, 1], [], []>} : vector<8x128xbf16>, vector<128x256xbf16>, vector<8x256xf32> -> vector<8x256xf32>
    %237 = vector.extract_strided_slice %234 {offsets = [0, 0], sizes = [8, 128], strides = [1, 1]} : vector<8x384xf32> to vector<8x128xf32>
    %238 = vector.extract_strided_slice %236 {offsets = [0, 0], sizes = [8, 128], strides = [1, 1]} : vector<8x256xf32> to vector<8x128xf32>
    %239 = arith.addf %237, %238 : vector<8x128xf32>
    %240 = arith.negf %239 : vector<8x128xf32>
    %241 = math.exp %240 : vector<8x128xf32>
    %cst_60 = arith.constant 1.000000e+00 : f32
    %242 = vector.broadcast %cst_60 : f32 to vector<8x128xf32>
    %243 = arith.addf %242, %241 : vector<8x128xf32>
    %244 = arith.divf %242, %243 : vector<8x128xf32>
    %245 = vector.extract_strided_slice %234 {offsets = [0, 128], sizes = [8, 128], strides = [1, 1]} : vector<8x384xf32> to vector<8x128xf32>
    %246 = vector.extract_strided_slice %236 {offsets = [0, 128], sizes = [8, 128], strides = [1, 1]} : vector<8x256xf32> to vector<8x128xf32>
    %247 = arith.addf %245, %246 : vector<8x128xf32>
    %248 = arith.negf %247 : vector<8x128xf32>
    %249 = math.exp %248 : vector<8x128xf32>
    %cst_61 = arith.constant 1.000000e+00 : f32
    %250 = vector.broadcast %cst_61 : f32 to vector<8x128xf32>
    %251 = arith.addf %250, %249 : vector<8x128xf32>
    %252 = arith.divf %250, %251 : vector<8x128xf32>
    %253 = vector.extract_strided_slice %234 {offsets = [0, 256], sizes = [8, 128], strides = [1, 1]} : vector<8x384xf32> to vector<8x128xf32>
    %254 = arith.mulf %252, %230 : vector<8x128xf32>
    %255 = arith.truncf %254 : vector<8x128xf32> to vector<8x128xbf16>
    %cst_62 = arith.constant dense<0.000000e+00> : vector<8x128xf32>
    %256 = tpu.matmul %255, %12, %cst_62 {dimension_numbers = #tpu.dot_dimension_numbers<[1], [0], [0], [1], [0, 0, 1, 1], [], []>} : vector<8x128xbf16>, vector<128x128xbf16>, vector<8x128xf32> -> vector<8x128xf32>
    %257 = arith.addf %253, %256 : vector<8x128xf32>
    %258 = math.tanh %257 : vector<8x128xf32>
    %259 = arith.subf %258, %230 : vector<8x128xf32>
    %260 = arith.mulf %244, %259 : vector<8x128xf32>
    %261 = arith.addf %230, %260 : vector<8x128xf32>
    %c8_i32_63 = arith.constant 8 : i32
    %c0_64 = arith.constant 0 : index
    %c0_65 = arith.constant 0 : index
    %262 = vector.load %arg7[%c0_64, %c0_65] : memref<8x128xf32, #tpu.memory_space<vmem>>, vector<8x128xf32>
    tpu.vector_store %arg7[%c0_64, %c0_65], %261 {strides = array<i32>} : memref<8x128xf32, #tpu.memory_space<vmem>>, vector<8x128xf32>,
    return
  }
  func.func @transform_0(%arg0: i32, %arg1: i32) -> (i32, i32, i32) {
    %c0_i32 = arith.constant 0 : i32
    %c0_i32_0 = arith.constant 0 : i32
    return %arg1, %arg0, %c0_i32 : i32, i32, i32
  }
  func.func @transform_5(%arg0: i32, %arg1: i32) -> (i32, i32) {
    %c0_i32 = arith.constant 0 : i32
    %c0_i32_0 = arith.constant 0 : i32
    return %arg0, %c0_i32 : i32, i32
  }
}

</mosaic_0001>

<llo_original>
// kernel: tpu_custom_call.1
$region0: #{tpu_custom_call.1}
  #allocation0 [shape = 'u32[]', space=smem, size = 0x4, offset = 0x4, fixed_abs, tag = 'smem constant byte address 0x4 - core index']
  #allocation1 [shape = 'u32[144,128]{1,0:T(1,128)}', space=vmem, size = 0x12000, scoped, tag = 'internal scratch']
  #allocation2 [shape = 'bf16[128,384]{1,0:T(16,128)(2,1)}', space=vmem, size = 0x18000, scoped, tag = 'scratch operand']
  #allocation3 [shape = 'f32[1,384]{1,0:T(1,128)}', space=vmem, size = 0x600, scoped, tag = 'scratch operand']
  #allocation4 [shape = 'bf16[128,256]{1,0:T(16,128)(2,1)}', space=vmem, size = 0x10000, scoped, tag = 'scratch operand']
  #allocation5 [shape = 'bf16[128,128]{1,0:T(16,128)(2,1)}', space=vmem, size = 0x8000, scoped, tag = 'scratch operand']
  #allocation6 [shape = 'f32[64,384]{1,0:T(8,128)}', space=vmem, size = 0x18000, scoped, tag = 'scratch operand']
  #allocation7 [shape = 's32[4]{0}', space=sflag, size = 0x10, scoped, tag = 'scratch operand']
  #allocation12 [shape = 's32[]', space=sflag, size = 0x4, offset = 0, fixed_abs, tag = 'sflag constant byte address 0x0 - dummy sync flag']
  #allocation14 [shape = 's32[]', space=sflag, size = 0x4, offset = 0, fixed_abs, tag = 'sflag constant byte address 0x0 - dummy sync flag']
  #allocation15 [shape = 's32[]', space=sflag, size = 0x4, offset = 0, fixed_abs, tag = 'sflag constant byte address 0x0 - dummy sync flag']
  #allocation17 [shape = 's32[]', space=sflag, size = 0x4, offset = 0, fixed_abs, tag = 'sflag constant byte address 0x0 - dummy sync flag']
  #allocation18 [shape = 's32[]', space=sflag, size = 0x4, offset = 0, fixed_abs, tag = 'sflag constant byte address 0x0 - dummy sync flag']
  #allocation19 [shape = 'u32[]', space=smem, size = 0x4, offset = 0x44, fixed_abs, tag = 'smem constant byte address 0x44 - assertion arg 0']
  #allocation20 [shape = 'u32[]', space=smem, size = 0x4, offset = 0x48, fixed_abs, tag = 'smem constant byte address 0x48 - assertion arg 1']
  %s0 = inlined_call_operand.hbm [shape: bf16[8,8,128], index: 0, kind: input, shape index: {}]
  %s1 = inlined_call_operand.hbm [shape: bf16[128,384], index: 1, kind: input, shape index: {}]
  %s2 = inlined_call_operand.vmem [shape: f32[1,384], index: 2, kind: input, shape index: {}]
  %s3 = inlined_call_operand.hbm [shape: bf16[128,256], index: 3, kind: input, shape index: {}]
  %s4 = inlined_call_operand.hbm [shape: bf16[128,128], index: 4, kind: input, shape index: {}]
  %s5 = inlined_call_operand.hbm [shape: f32[8,128], index: 5, kind: output, shape index: {}]
  %s6 = sld [smem:[#allocation0]]
  $region56: #{tpu_custom_call.1} parent=0
    _
  %s8 = ssub.s32 1, %s6
  %s9 = scalar_select 0, %s8, %s6
  $region1: #{tpu_custom_call.1} parent=0
    #allocation8 [shape = 'u8[16384]{0}', space=vmem, size = 0x4000, scoped, tag = 'input window, operand 0, single buffered']
    #allocation9 [shape = 's32[1]{0}', space=sflag, size = 0x4, scoped, tag = 'scoped memory for tpu_custom_call.1']
    #allocation10 [shape = 's32[1]{0}', space=sflag, size = 0x4, scoped, tag = 'scoped memory for tpu_custom_call.1']
    #allocation11 [shape = 'u8[4096]{0}', space=vmem, size = 0x1000, scoped, tag = 'output window, operand 0, single buffered']
    %10 = vsyncpa [#allocation9], 0
    %11 = vsyncpa [#allocation10], 0
    // Predicated region
    $region2: #{tpu_custom_call.1} parent=1 // pred_check
      _
    $region3: #{tpu_custom_call.1} parent=1 // pred_check_branch
      %13 = sbr.rel (0) target = $region5
    $region4: #{tpu_custom_call.1} parent=1 // pred_region
      %s15 = ssub.s32 512, 512
      %16 = vsyncadd [#allocation9], %s15
      %s17 = sshll.u32 [#allocation8], 4
      %s18 = int_to_ptr.vmem [resolvable:$true] %s17
      %23 = dma.hbm_to_vmem [thread:$0]  %s0, 512, %s18, [#allocation9], 64, 64, 4
    $region5: #{tpu_custom_call.1} parent=1 // pred_fallthru
      _
    // Predicated region
    $region6: #{tpu_custom_call.1} parent=1 // pred_check
      _
    $region7: #{tpu_custom_call.1} parent=1 // pred_check_branch
      %25 = sbr.rel (0) target = $region9
    $region8: #{tpu_custom_call.1} parent=1 // pred_region
      %26 = dma.done [#allocation9], 512
    $region9: #{tpu_custom_call.1} parent=1 // pred_fallthru
      _
    %p28 = scmp.eq.s32.totalorder 0, 0
    // Predicated region
    $region10: #{tpu_custom_call.1} parent=1 // pred_check
      %p29 = pneg %p28
    $region11: #{tpu_custom_call.1} parent=1 // pred_check_branch
      %31 = sbr.rel (%p29) target = $region13
    $region12: #{tpu_custom_call.1} parent=1 // pred_region
      #allocation13 [shape = 'u32[9]{0}', space=smem, size = 0x24, scoped, tag = 'DMA stride descriptor']
      #allocation16 [shape = 'u32[9]{0}', space=smem, size = 0x24, scoped, tag = 'DMA stride descriptor']
      %s33 = sshll.u32 1, 14
      %s34 = sxor.u32 4294967295, %s33
      %s36 = sld [smem:[#allocation0]]
      %s37 = sadd.s32 2, %s36
      %s39 = sshll.u32 7, 26
      %s40 = sxor.u32 4294967295, %s39
      %s41 = sand.u32 0, %s40
      %s42 = sshll.u32 %s37, 26
      %s43 = sor.u32 %s41, %s42
      %s44 = sshll.u32 [#allocation2], 4
      %s45 = int_to_ptr.vmem [resolvable:$true] %s44
      %48 = sst [smem:[#allocation13]] 384
      %s49 = scalar_lea.smem [#allocation13], 1
      %50 = sst [smem:[%s49]] 384
      %s51 = scalar_lea.smem [#allocation13], 2
      %52 = sst [smem:[%s51]] 3
      %s53 = scalar_lea.smem [#allocation13], 3
      %54 = sst [smem:[%s53]] 64
      %s55 = scalar_lea.smem [#allocation13], 4
      %56 = sst [smem:[%s55]] 128
      %s57 = scalar_lea.smem [#allocation13], 5
      %58 = sst [smem:[%s57]] 2
      %s59 = scalar_lea.smem [#allocation13], 6
      %60 = sst [smem:[%s59]] 192
      %s61 = scalar_lea.smem [#allocation13], 7
      %62 = sst [smem:[%s61]] 64
      %s63 = scalar_lea.smem [#allocation13], 8
      %64 = sst [smem:[%s63]] 4
      %66 = dma.general %s1, 3072, %s45, [#allocation7], [#allocation12], [#allocation13], %s43, 0
      %s67 = scalar_lea.sflag [#allocation7], 1
      %p69 = scmp.lt.u32.totalorder 3, 8
      %p70 = pneg %p69
      // Predicated region
      $region14: #{tpu_custom_call.1} parent=12 // pred_check
        _
      $region15: #{tpu_custom_call.1} parent=12 // pred_check_branch
        %72 = sbr.rel (%p69) target = $region17
      $region16: #{tpu_custom_call.1} parent=12 // pred_region
        %s87 = sand.u32 3, 7
        %p88 = scmp.eq.s32.totalorder %s87, 0
        %p89 = pneg %p88
        // Predicated region
        $region29: #{tpu_custom_call.1} parent=16 // pred_check
          _
        $region30: #{tpu_custom_call.1} parent=16 // pred_check_branch
          %91 = sbr.rel (%p88) target = $region32
        $region31: #{tpu_custom_call.1} parent=16 // pred_region
          %s92 = sand.u32 3, 7
          %s93 = ssub.s32 3, %s92
          %s94 = scalar_lea.vmem %s2, %s93
          %s95 = ssub.s32 3, %s92
          %s96 = scalar_lea.vmem [#allocation3], %s95
          %s97 = sshllo.u32 0, %s92
          loop: start=0, step=1, limit=1
          $region33: #{tpu_custom_call.1} parent=31 // loop_pre_header
            _
          $region34: #{tpu_custom_call.1} parent=31 // loop_header
            %s99 = sphi 0, %s103
            %p100 = scmp.ge.s32.totalorder %s99, 1
            %s104 = sphi %s94, %s94
            %s105 = sphi %s96, %s96
          $region35: #{tpu_custom_call.1} parent=31 // loop_header_branch
            %102 = sbr.rel (%p100) target = $region39
          $region36: #{tpu_custom_call.1} parent=31 // loop_body
            %v106 = vld [vmem:[%s104] sm:%s97]
            %107 = vst [vmem:[%s105] sm:%s97] %v106
          $region37: #{tpu_custom_call.1} parent=31 // loop_footer
            %s103 = sadd.s32 1, %s99
          $region38: #{tpu_custom_call.1} parent=31 // loop_footer_branch
            %98 = sbr.rel target = $region34
          $region39: #{tpu_custom_call.1} parent=31 // loop_exit
            _
        $region32: #{tpu_custom_call.1} parent=16 // pred_fallthru
          _
      $region17: #{tpu_custom_call.1} parent=12 // pred_fallthru
        _
      // Predicated region
      $region18: #{tpu_custom_call.1} parent=12 // pred_check
        %p73 = pneg %p69
      $region19: #{tpu_custom_call.1} parent=12 // pred_check_branch
        %75 = sbr.rel (%p73) target = $region21
      $region20: #{tpu_custom_call.1} parent=12 // pred_region
        %s76 = sshllo.u32 0, 3
        loop: start=0, step=1, limit=1
        $region22: #{tpu_custom_call.1} parent=20 // loop_pre_header
          _
        $region23: #{tpu_custom_call.1} parent=20 // loop_header
          %s78 = sphi 0, %s82
          %p79 = scmp.ge.s32.totalorder %s78, 1
          %s83 = sphi %s2, %s2
          %s84 = sphi [#allocation3], [#allocation3]
        $region24: #{tpu_custom_call.1} parent=20 // loop_header_branch
          %81 = sbr.rel (%p79) target = $region28
        $region25: #{tpu_custom_call.1} parent=20 // loop_body
          %v85 = vld [vmem:[%s83] sm:%s76]
          %86 = vst [vmem:[%s84] sm:%s76] %v85
        $region26: #{tpu_custom_call.1} parent=20 // loop_footer
          %s82 = sadd.s32 1, %s78
        $region27: #{tpu_custom_call.1} parent=20 // loop_footer_branch
          %77 = sbr.rel target = $region23
        $region28: #{tpu_custom_call.1} parent=20 // loop_exit
          _
      $region21: #{tpu_custom_call.1} parent=12 // pred_fallthru
        _
      // Predicated region
      $region40: #{tpu_custom_call.1} parent=12 // pred_check
        _
      $region41: #{tpu_custom_call.1} parent=12 // pred_check_branch
        %110 = sbr.rel (0) target = $region43
      $region42: #{tpu_custom_call.1} parent=12 // pred_region
        %111 = vsyncadd %s67, 48
      $region43: #{tpu_custom_call.1} parent=12 // pred_fallthru
        _
      %s112 = scalar_lea.sflag [#allocation7], 2
      %s114 = sshll.u32 1, 14
      %s115 = sxor.u32 4294967295, %s114
      %s117 = sadd.s32 2, %s36
      %s119 = sshll.u32 7, 26
      %s120 = sxor.u32 4294967295, %s119
      %s121 = sand.u32 0, %s120
      %s122 = sshll.u32 %s117, 26
      %s123 = sor.u32 %s121, %s122
      %s124 = sshll.u32 [#allocation4], 4
      %s125 = int_to_ptr.vmem [resolvable:$true] %s124
      %128 = sst [smem:[#allocation16]] 256
      %s129 = scalar_lea.smem [#allocation16], 1
      %130 = sst [smem:[%s129]] 256
      %s131 = scalar_lea.smem [#allocation16], 2
      %132 = sst [smem:[%s131]] 2
      %s133 = scalar_lea.smem [#allocation16], 3
      %134 = sst [smem:[%s133]] 64
      %s135 = scalar_lea.smem [#allocation16], 4
      %136 = sst [smem:[%s135]] 128
      %s137 = scalar_lea.smem [#allocation16], 5
      %138 = sst [smem:[%s137]] 2
      %s139 = scalar_lea.smem [#allocation16], 6
      %140 = sst [smem:[%s139]] 128
      %s141 = scalar_lea.smem [#allocation16], 7
      %142 = sst [smem:[%s141]] 64
      %s143 = scalar_lea.smem [#allocation16], 8
      %144 = sst [smem:[%s143]] 4
      %146 = dma.general %s3, 2048, %s125, %s112, [#allocation15], [#allocation16], %s123, 0
      %s147 = scalar_lea.sflag [#allocation7], 3
      // Predicated region
      $region44: #{tpu_custom_call.1} parent=12 // pred_check
        _
      $region45: #{tpu_custom_call.1} parent=12 // pred_check_branch
        %149 = sbr.rel target = $region47
      $region46: #{tpu_custom_call.1} parent=12 // pred_region
        %150 = sst [smem:[#allocation19]] [#allocation18]
        %151 = sst [smem:[#allocation20]] [#allocation17]
      $region47: #{tpu_custom_call.1} parent=12 // pred_fallthru
        _
      %153 = shalt.err (0)
      %s155 = sshll.u32 [#allocation5], 4
      %s156 = int_to_ptr.vmem [resolvable:$true] %s155
      %158 = dma.hbm_to_vmem [thread:$0]  %s4, 1024, %s156, %s147
      %s159 = smul.u32 4, 16
      %s160 = smul.u32 %s159, 3
      %s161 = sshll.u32 %s160, 4
      %162 = dma.done [#allocation7], %s161
      %s163 = smul.u32 1, 3
      %s164 = sshll.u32 %s163, 4
      %165 = dma.done %s67, %s164
      %s166 = smul.u32 %s159, 2
      %s167 = sshll.u32 %s166, 4
      %168 = dma.done %s112, %s167
      %s169 = smul.u32 %s159, 1
      %s170 = sshll.u32 %s169, 4
      %171 = dma.done %s147, %s170
      %172 = vst [vmem:[#allocation11] sm:$0xff] 0.0
    $region13: #{tpu_custom_call.1} parent=1 // pred_fallthru
      _
    %v173 = vld [vmem:[#allocation8] sm:$0xf]
    %v174 = vld [vmem:[#allocation8 + $0x4] sm:$0xf]
    %v175 = vld [vmem:[#allocation8 + $0x8] sm:$0xf]
    %v176 = vld [vmem:[#allocation8 + $0xc] sm:$0xf]
    %v177 = vld [vmem:[#allocation8 + $0x10] sm:$0xf]
    %v178 = vld [vmem:[#allocation8 + $0x14] sm:$0xf]
    %v179 = vld [vmem:[#allocation8 + $0x18] sm:$0xf]
    %v180 = vld [vmem:[#allocation8 + $0x1c] sm:$0xf]
    %v181 = vld [vmem:[#allocation2] sm:$0xff]
    %v182 = vld [vmem:[#allocation2 + $0x8] sm:$0xff]
    %v183 = vld [vmem:[#allocation2 + $0x10] sm:$0xff]
    %v184 = vld [vmem:[#allocation2 + $0x18] sm:$0xff]
    %v185 = vld [vmem:[#allocation2 + $0x20] sm:$0xff]
    %v186 = vld [vmem:[#allocation2 + $0x28] sm:$0xff]
    %v187 = vld [vmem:[#allocation2 + $0x30] sm:$0xff]
    %v188 = vld [vmem:[#allocation2 + $0x38] sm:$0xff]
    %v189 = vld [vmem:[#allocation2 + $0x40] sm:$0xff]
    %v190 = vld [vmem:[#allocation2 + $0x48] sm:$0xff]
    %v191 = vld [vmem:[#allocation2 + $0x50] sm:$0xff]
    %v192 = vld [vmem:[#allocation2 + $0x58] sm:$0xff]
    %v193 = vld [vmem:[#allocation2 + $0x60] sm:$0xff]
    %v194 = vld [vmem:[#allocation2 + $0x68] sm:$0xff]
    %v195 = vld [vmem:[#allocation2 + $0x70] sm:$0xff]
    %v196 = vld [vmem:[#allocation2 + $0x78] sm:$0xff]
    %v197 = vld [vmem:[#allocation2 + $0x80] sm:$0xff]
    %v198 = vld [vmem:[#allocation2 + $0x88] sm:$0xff]
    %v199 = vld [vmem:[#allocation2 + $0x90] sm:$0xff]
    %v200 = vld [vmem:[#allocation2 + $0x98] sm:$0xff]
    %v201 = vld [vmem:[#allocation2 + $0xa0] sm:$0xff]
    %v202 = vld [vmem:[#allocation2 + $0xa8] sm:$0xff]
    %v203 = vld [vmem:[#allocation2 + $0xb0] sm:$0xff]
    %v204 = vld [vmem:[#allocation2 + $0xb8] sm:$0xff]
    %v205 = vld [vmem:[#allocation3] sm:$0x7]
    %v207 = vlaneseq
    %v208 = vshrl.u32 %v207, 7
    %v209 = vsub.s32 0, %v208
    %v210 = vrot.slane %v205, %v209
    %v211 = vlaneseq
    %v212 = vshrl.u32 %v211, 7
    %v213 = vsub.s32 1, %v212
    %v214 = vrot.slane %v205, %v213
    %v215 = vlaneseq
    %v216 = vshrl.u32 %v215, 7
    %v217 = vsub.s32 2, %v216
    %v218 = vrot.slane %v205, %v217
    %v230 = vunpack.c.l.b16 %v173
    %v231 = vunpack.c.l.b16 %v174
    %v232 = vunpack.c.l.b16 %v175
    %v233 = vunpack.c.l.b16 %v176
    %v234 = vunpack.c.l.b16 %v177
    %v235 = vunpack.c.l.b16 %v178
    %v236 = vunpack.c.l.b16 %v179
    %v237 = vunpack.c.l.b16 %v180
    %v238 = vpack.c.b16 %v231, %v230
    %v239 = vpack.c.b16 %v233, %v232
    %v240 = vpack.c.b16 %v235, %v234
    %v241 = vpack.c.b16 %v237, %v236
    %246 = vmatprep.subr.bf16.mxu0 %v182
    %247 = vmatpush1.bf16.msra.mxu0 %v181
    %248 = vmatprep.subr.bf16.mxu0 %v185
    %249 = vmatpush1.bf16.msra.mxu0 %v184
    %250 = vmatprep.subr.bf16.mxu0 %v188
    %251 = vmatpush1.bf16.msra.mxu0 %v187
    %252 = vmatprep.subr.bf16.mxu0 %v191
    %253 = vmatpush1.bf16.msra.mxu0 %v190
    %254 = vmatprep.subr.bf16.mxu0 %v194
    %255 = vmatpush1.bf16.msra.mxu0 %v193
    %256 = vmatprep.subr.bf16.mxu0 %v197
    %257 = vmatpush1.bf16.msra.mxu0 %v196
    %258 = vmatprep.subr.bf16.mxu0 %v200
    %259 = vmatpush1.bf16.msra.mxu0 %v199
    %260 = vmatprep.subr.bf16.mxu0 %v203
    %261 = vmatpush1.bf16.msra.mxu0 %v202
    %262 = vmatprep.subr.bf16.mxu0 0
    %263 = vmatpush1.bf16.msra.mxu0 0
    %264 = vmatprep.subr.bf16.mxu0 0
    %265 = vmatpush1.bf16.msra.mxu0 0
    %266 = vmatprep.subr.bf16.mxu0 0
    %267 = vmatpush1.bf16.msra.mxu0 0
    %268 = vmatprep.subr.bf16.mxu0 0
    %269 = vmatpush1.bf16.msra.mxu0 0
    %270 = vmatprep.subr.bf16.mxu0 0
    %271 = vmatpush1.bf16.msra.mxu0 0
    %272 = vmatprep.subr.bf16.mxu0 0
    %273 = vmatpush1.bf16.msra.mxu0 0
    %274 = vmatprep.subr.bf16.mxu0 0
    %275 = vmatpush1.bf16.msra.mxu0 0
    %276 = vmatprep.subr.bf16.mxu0 0
    %277 = vmatpush1.bf16.msra.mxu0 0
    %278 = vmatprep.mubr.bf16.mxu0 0
    %279 = vmatmul.mubr.bf16.gmra.mrb[0].mxu0 %v238
    %v280 = vpop.f32.mrb[0].mxu0
    %v281 = vadd.f32 %v210, %v280
    %v282 = vpop.f32.mrb[0].mxu0
    %v283 = vadd.f32 %v214, %v282
    %v284 = vpop.f32.mrb[0].mxu0
    %v285 = vadd.f32 %v210, %v284
    %v286 = vpop.f32.mrb[0].mxu0
    %v287 = vadd.f32 %v214, %v286
    %288 = vmatprep.mubr.bf16.mxu0 0
    %289 = vmatmul.mubr.bf16.gmra.mrb[0].mxu0 %v239
    %v290 = vpop.f32.mrb[0].mxu0
    %v291 = vadd.f32 %v210, %v290
    %v292 = vpop.f32.mrb[0].mxu0
    %v293 = vadd.f32 %v214, %v292
    %v294 = vpop.f32.mrb[0].mxu0
    %v295 = vadd.f32 %v210, %v294
    %v296 = vpop.f32.mrb[0].mxu0
    %v297 = vadd.f32 %v214, %v296
    %298 = vmatprep.mubr.bf16.mxu0 0
    %299 = vmatmul.mubr.bf16.gmra.mrb[0].mxu0 %v240
    %v300 = vpop.f32.mrb[0].mxu0
    %v301 = vadd.f32 %v210, %v300
    %v302 = vpop.f32.mrb[0].mxu0
    %v303 = vadd.f32 %v214, %v302
    %v304 = vpop.f32.mrb[0].mxu0
    %v305 = vadd.f32 %v210, %v304
    %v306 = vpop.f32.mrb[0].mxu0
    %v307 = vadd.f32 %v214, %v306
    %308 = vmatprep.mubr.bf16.mxu0 0
    %309 = vmatmul.mubr.bf16.gmra.mrb[0].mxu0 %v241
    %v310 = vpop.f32.mrb[0].mxu0
    %v311 = vadd.f32 %v210, %v310
    %v312 = vpop.f32.mrb[0].mxu0
    %v313 = vadd.f32 %v214, %v312
    %v314 = vpop.f32.mrb[0].mxu0
    %v315 = vadd.f32 %v210, %v314
    %v316 = vpop.f32.mrb[0].mxu0
    %v317 = vadd.f32 %v214, %v316
    %318 = vdwg.mxu0
    %319 = vmatprep.subr.bf16.mxu0 0
    %320 = vmatpush1.bf16.msra.mxu0 %v183
    %321 = vmatprep.subr.bf16.mxu0 0
    %322 = vmatpush1.bf16.msra.mxu0 %v186
    %323 = vmatprep.subr.bf16.mxu0 0
    %324 = vmatpush1.bf16.msra.mxu0 %v189
    %325 = vmatprep.subr.bf16.mxu0 0
    %326 = vmatpush1.bf16.msra.mxu0 %v192
    %327 = vmatprep.subr.bf16.mxu0 0
    %328 = vmatpush1.bf16.msra.mxu0 %v195
    %329 = vmatprep.subr.bf16.mxu0 0
    %330 = vmatpush1.bf16.msra.mxu0 %v198
    %331 = vmatprep.subr.bf16.mxu0 0
    %332 = vmatpush1.bf16.msra.mxu0 %v201
    %333 = vmatprep.subr.bf16.mxu0 0
    %334 = vmatpush1.bf16.msra.mxu0 %v204
    %335 = vmatprep.subr.bf16.mxu0 0
    %336 = vmatpush1.bf16.msra.mxu0 0
    %337 = vmatprep.subr.bf16.mxu0 0
    %338 = vmatpush1.bf16.msra.mxu0 0
    %339 = vmatprep.subr.bf16.mxu0 0
    %340 = vmatpush1.bf16.msra.mxu0 0
    %341 = vmatprep.subr.bf16.mxu0 0
    %342 = vmatpush1.bf16.msra.mxu0 0
    %343 = vmatprep.subr.bf16.mxu0 0
    %344 = vmatpush1.bf16.msra.mxu0 0
    %345 = vmatprep.subr.bf16.mxu0 0
    %346 = vmatpush1.bf16.msra.mxu0 0
    %347 = vmatprep.subr.bf16.mxu0 0
    %348 = vmatpush1.bf16.msra.mxu0 0
    %349 = vmatprep.subr.bf16.mxu0 0
    %350 = vmatpush1.bf16.msra.mxu0 0
    %351 = vmatprep.mubr.bf16.mxu0 0
    %352 = vmatmul.mubr.bf16.gmra.mrb[0].mxu0 %v238
    %v353 = vpop.f32.mrb[0].mxu0
    %v354 = vadd.f32 %v218, %v353
    %v355 = vpop.f32.mrb[0].mxu0
    %v356 = vpop.f32.mrb[0].mxu0
    %v357 = vadd.f32 %v218, %v356
    %v358 = vpop.f32.mrb[0].mxu0
    %359 = vmatprep.mubr.bf16.mxu0 0
    %360 = vmatmul.mubr.bf16.gmra.mrb[0].mxu0 %v239
    %v361 = vpop.f32.mrb[0].mxu0
    %v362 = vadd.f32 %v218, %v361
    %v363 = vpop.f32.mrb[0].mxu0
    %v364 = vpop.f32.mrb[0].mxu0
    %v365 = vadd.f32 %v218, %v364
    %v366 = vpop.f32.mrb[0].mxu0
    %367 = vmatprep.mubr.bf16.mxu0 0
    %368 = vmatmul.mubr.bf16.gmra.mrb[0].mxu0 %v240
    %v369 = vpop.f32.mrb[0].mxu0
    %v370 = vadd.f32 %v218, %v369
    %v371 = vpop.f32.mrb[0].mxu0
    %v372 = vpop.f32.mrb[0].mxu0
    %v373 = vadd.f32 %v218, %v372
    %v374 = vpop.f32.mrb[0].mxu0
    %375 = vmatprep.mubr.bf16.mxu0 0
    %376 = vmatmul.mubr.bf16.gmra.mrb[0].mxu0 %v241
    %v377 = vpop.f32.mrb[0].mxu0
    %v378 = vadd.f32 %v218, %v377
    %v379 = vpop.f32.mrb[0].mxu0
    %v380 = vpop.f32.mrb[0].mxu0
    %v381 = vadd.f32 %v218, %v380
    %v382 = vpop.f32.mrb[0].mxu0
    %383 = vdwg.mxu0
    %384 = vst [vmem:[#allocation6] sm:$0xff] %v281
    %385 = vst [vmem:[#allocation6 + $0x8] sm:$0xff] %v283
    %386 = vst [vmem:[#allocation6 + $0x10] sm:$0xff] %v354
    %387 = vst [vmem:[#allocation6 + $0x18] sm:$0xff] %v285
    %388 = vst [vmem:[#allocation6 + $0x20] sm:$0xff] %v287
    %389 = vst [vmem:[#allocation6 + $0x28] sm:$0xff] %v357
    %390 = vst [vmem:[#allocation6 + $0x30] sm:$0xff] %v291
    %391 = vst [vmem:[#allocation6 + $0x38] sm:$0xff] %v293
    %392 = vst [vmem:[#allocation6 + $0x40] sm:$0xff] %v362
    %393 = vst [vmem:[#allocation6 + $0x48] sm:$0xff] %v295
    %394 = vst [vmem:[#allocation6 + $0x50] sm:$0xff] %v297
    %395 = vst [vmem:[#allocation6 + $0x58] sm:$0xff] %v365
    %396 = vst [vmem:[#allocation6 + $0x60] sm:$0xff] %v301
    %397 = vst [vmem:[#allocation6 + $0x68] sm:$0xff] %v303
    %398 = vst [vmem:[#allocation6 + $0x70] sm:$0xff] %v370
    %399 = vst [vmem:[#allocation6 + $0x78] sm:$0xff] %v305
    %400 = vst [vmem:[#allocation6 + $0x80] sm:$0xff] %v307
    %401 = vst [vmem:[#allocation6 + $0x88] sm:$0xff] %v373
    %402 = vst [vmem:[#allocation6 + $0x90] sm:$0xff] %v311
    %403 = vst [vmem:[#allocation6 + $0x98] sm:$0xff] %v313
    %404 = vst [vmem:[#allocation6 + $0xa0] sm:$0xff] %v378
    %405 = vst [vmem:[#allocation6 + $0xa8] sm:$0xff] %v315
    %406 = vst [vmem:[#allocation6 + $0xb0] sm:$0xff] %v317
    %407 = vst [vmem:[#allocation6 + $0xb8] sm:$0xff] %v381
    %v408 = vld [vmem:[#allocation4] sm:$0xff]
    %v409 = vld [vmem:[#allocation4 + $0x8] sm:$0xff]
    %v410 = vld [vmem:[#allocation4 + $0x10] sm:$0xff]
    %v411 = vld [vmem:[#allocation4 + $0x18] sm:$0xff]
    %v412 = vld [vmem:[#allocation4 + $0x20] sm:$0xff]
    %v413 = vld [vmem:[#allocation4 + $0x28] sm:$0xff]
    %v414 = vld [vmem:[#allocation4 + $0x30] sm:$0xff]
    %v415 = vld [vmem:[#allocation4 + $0x38] sm:$0xff]
    %v416 = vld [vmem:[#allocation4 + $0x40] sm:$0xff]
    %v417 = vld [vmem:[#allocation4 + $0x48] sm:$0xff]
    %v418 = vld [vmem:[#allocation4 + $0x50] sm:$0xff]
    %v419 = vld [vmem:[#allocation4 + $0x58] sm:$0xff]
    %v420 = vld [vmem:[#allocation4 + $0x60] sm:$0xff]
    %v421 = vld [vmem:[#allocation4 + $0x68] sm:$0xff]
    %v422 = vld [vmem:[#allocation4 + $0x70] sm:$0xff]
    %v423 = vld [vmem:[#allocation4 + $0x78] sm:$0xff]
    %v424 = vld [vmem:[#allocation5] sm:$0xff]
    %v425 = vld [vmem:[#allocation5 + $0x8] sm:$0xff]
    %v426 = vld [vmem:[#allocation5 + $0x10] sm:$0xff]
    %v427 = vld [vmem:[#allocation5 + $0x18] sm:$0xff]
    %v428 = vld [vmem:[#allocation5 + $0x20] sm:$0xff]
    %v429 = vld [vmem:[#allocation5 + $0x28] sm:$0xff]
    %v430 = vld [vmem:[#allocation5 + $0x30] sm:$0xff]
    %v431 = vld [vmem:[#allocation5 + $0x38] sm:$0xff]
    %v432 = vld [vmem:[#allocation11] sm:$0xff]
    %s433 = smul.u32 0, 3
    %s434 = smul.addr %s433, 8
    %s435 = scalar_lea.vmem [#allocation6], %s434
    %v436 = vld [vmem:[%s435] sm:$0xff]
    %v437 = vld [vmem:[%s435 + $0x8] sm:$0xff]
    %v438 = vld [vmem:[%s435 + $0x10] sm:$0xff]
    %v439 = vpack.c.bf16 %v432, %v432
    %440 = vmatprep.subr.bf16.mxu0 %v409
    %441 = vmatpush1.bf16.msra.mxu0 %v408
    %442 = vmatprep.subr.bf16.mxu0 %v411
    %443 = vmatpush1.bf16.msra.mxu0 %v410
    %444 = vmatprep.subr.bf16.mxu0 %v413
    %445 = vmatpush1.bf16.msra.mxu0 %v412
    %446 = vmatprep.subr.bf16.mxu0 %v415
    %447 = vmatpush1.bf16.msra.mxu0 %v414
    %448 = vmatprep.subr.bf16.mxu0 %v417
    %449 = vmatpush1.bf16.msra.mxu0 %v416
    %450 = vmatprep.subr.bf16.mxu0 %v419
    %451 = vmatpush1.bf16.msra.mxu0 %v418
    %452 = vmatprep.subr.bf16.mxu0 %v421
    %453 = vmatpush1.bf16.msra.mxu0 %v420
    %454 = vmatprep.subr.bf16.mxu0 %v423
    %455 = vmatpush1.bf16.msra.mxu0 %v422
    %456 = vmatprep.subr.bf16.mxu0 0
    %457 = vmatpush1.bf16.msra.mxu0 0
    %458 = vmatprep.subr.bf16.mxu0 0
    %459 = vmatpush1.bf16.msra.mxu0 0
    %460 = vmatprep.subr.bf16.mxu0 0
    %461 = vmatpush1.bf16.msra.mxu0 0
    %462 = vmatprep.subr.bf16.mxu0 0
    %463 = vmatpush1.bf16.msra.mxu0 0
    %464 = vmatprep.subr.bf16.mxu0 0
    %465 = vmatpush1.bf16.msra.mxu0 0
    %466 = vmatprep.subr.bf16.mxu0 0
    %467 = vmatpush1.bf16.msra.mxu0 0
    %468 = vmatprep.subr.bf16.mxu0 0
    %469 = vmatpush1.bf16.msra.mxu0 0
    %470 = vmatprep.subr.bf16.mxu0 0
    %471 = vmatpush1.bf16.msra.mxu0 0
    %472 = vmatprep.mubr.bf16.mxu0 0
    %473 = vmatmul.mubr.bf16.gmra.mrb[0].mxu0 %v439
    %v474 = vpop.f32.mrb[0].mxu0
    %v475 = vadd.f32 0.0, %v474
    %v476 = vpop.f32.mrb[0].mxu0
    %v477 = vadd.f32 0.0, %v476
    %v478 = vpop.f32.mrb[0].mxu0
    %v479 = vpop.f32.mrb[0].mxu0
    %480 = vdwg.mxu0
    %v481 = vadd.f32 %v436, %v475
    %v482 = vxor.u32 %v481, 2147483648
    %v483 = vmul.f32 %v482, 1.442695
    %v484 = vpow.pop %v483
    %v485 = vadd.f32 %v484, 1.0
    %v486 = vrcp.pop %v485
    %v487 = vmul.f32 1.0, %v486
    %v488 = vadd.f32 %v437, %v477
    %v489 = vxor.u32 %v488, 2147483648
    %v490 = vmul.f32 %v489, 1.442695
    %v491 = vpow.pop %v490
    %v492 = vadd.f32 %v491, 1.0
    %v493 = vrcp.pop %v492
    %v494 = vmul.f32 1.0, %v493
    %v495 = vmul.f32 %v494, %v432
    %v496 = vpack.c.bf16 %v495, %v495
    %497 = vmatprep.subr.bf16.mxu0 0
    %498 = vmatpush1.bf16.msra.mxu0 %v424
    %499 = vmatprep.subr.bf16.mxu0 0
    %500 = vmatpush1.bf16.msra.mxu0 %v425
    %501 = vmatprep.subr.bf16.mxu0 0
    %502 = vmatpush1.bf16.msra.mxu0 %v426
    %503 = vmatprep.subr.bf16.mxu0 0
    %504 = vmatpush1.bf16.msra.mxu0 %v427
    %505 = vmatprep.subr.bf16.mxu0 0
    %506 = vmatpush1.bf16.msra.mxu0 %v428
    %507 = vmatprep.subr.bf16.mxu0 0
    %508 = vmatpush1.bf16.msra.mxu0 %v429
    %509 = vmatprep.subr.bf16.mxu0 0
    %510 = vmatpush1.bf16.msra.mxu0 %v430
    %511 = vmatprep.subr.bf16.mxu0 0
    %512 = vmatpush1.bf16.msra.mxu0 %v431
    %513 = vmatprep.subr.bf16.mxu0 0
    %514 = vmatpush1.bf16.msra.mxu0 0
    %515 = vmatprep.subr.bf16.mxu0 0
    %516 = vmatpush1.bf16.msra.mxu0 0
    %517 = vmatprep.subr.bf16.mxu0 0
    %518 = vmatpush1.bf16.msra.mxu0 0
    %519 = vmatprep.subr.bf16.mxu0 0
    %520 = vmatpush1.bf16.msra.mxu0 0
    %521 = vmatprep.subr.bf16.mxu0 0
    %522 = vmatpush1.bf16.msra.mxu0 0
    %523 = vmatprep.subr.bf16.mxu0 0
    %524 = vmatpush1.bf16.msra.mxu0 0
    %525 = vmatprep.subr.bf16.mxu0 0
    %526 = vmatpush1.bf16.msra.mxu0 0
    %527 = vmatprep.subr.bf16.mxu0 0
    %528 = vmatpush1.bf16.msra.mxu0 0
    %529 = vmatprep.mubr.bf16.mxu0 0
    %530 = vmatmul.mubr.bf16.gmra.mrb[0].mxu0 %v496
    %v531 = vpop.f32.mrb[0].mxu0
    %v532 = vadd.f32 0.0, %v531
    %v533 = vpop.f32.mrb[0].mxu0
    %v534 = vpop.f32.mrb[0].mxu0
    %v535 = vpop.f32.mrb[0].mxu0
    %536 = vdwg.mxu0
    %v537 = vadd.f32 %v438, %v532
    %v538 = vtanh.pop %v537
    %v539 = vsub.f32 %v538, %v432
    %v540 = vmul.f32 %v487, %v539
    %v541 = vadd.f32 %v432, %v540
    %s542 = smul.u32 1, 3
    %s543 = smul.addr %s542, 8
    %s544 = scalar_lea.vmem [#allocation6], %s543
    %v545 = vld [vmem:[%s544] sm:$0xff]
    %v546 = vld [vmem:[%s544 + $0x8] sm:$0xff]
    %v547 = vld [vmem:[%s544 + $0x10] sm:$0xff]
    %v548 = vpack.c.bf16 %v541, %v541
    %549 = vmatprep.subr.bf16.mxu0 %v409
    %550 = vmatpush1.bf16.msra.mxu0 %v408
    %551 = vmatprep.subr.bf16.mxu0 %v411
    %552 = vmatpush1.bf16.msra.mxu0 %v410
    %553 = vmatprep.subr.bf16.mxu0 %v413
    %554 = vmatpush1.bf16.msra.mxu0 %v412
    %555 = vmatprep.subr.bf16.mxu0 %v415
    %556 = vmatpush1.bf16.msra.mxu0 %v414
    %557 = vmatprep.subr.bf16.mxu0 %v417
    %558 = vmatpush1.bf16.msra.mxu0 %v416
    %559 = vmatprep.subr.bf16.mxu0 %v419
    %560 = vmatpush1.bf16.msra.mxu0 %v418
    %561 = vmatprep.subr.bf16.mxu0 %v421
    %562 = vmatpush1.bf16.msra.mxu0 %v420
    %563 = vmatprep.subr.bf16.mxu0 %v423
    %564 = vmatpush1.bf16.msra.mxu0 %v422
    %565 = vmatprep.subr.bf16.mxu0 0
    %566 = vmatpush1.bf16.msra.mxu0 0
    %567 = vmatprep.subr.bf16.mxu0 0
    %568 = vmatpush1.bf16.msra.mxu0 0
    %569 = vmatprep.subr.bf16.mxu0 0
    %570 = vmatpush1.bf16.msra.mxu0 0
    %571 = vmatprep.subr.bf16.mxu0 0
    %572 = vmatpush1.bf16.msra.mxu0 0
    %573 = vmatprep.subr.bf16.mxu0 0
    %574 = vmatpush1.bf16.msra.mxu0 0
    %575 = vmatprep.subr.bf16.mxu0 0
    %576 = vmatpush1.bf16.msra.mxu0 0
    %577 = vmatprep.subr.bf16.mxu0 0
    %578 = vmatpush1.bf16.msra.mxu0 0
    %579 = vmatprep.subr.bf16.mxu0 0
    %580 = vmatpush1.bf16.msra.mxu0 0
    %581 = vmatprep.mubr.bf16.mxu0 0
    %582 = vmatmul.mubr.bf16.gmra.mrb[0].mxu0 %v548
    %v583 = vpop.f32.mrb[0].mxu0
    %v584 = vadd.f32 0.0, %v583
    %v585 = vpop.f32.mrb[0].mxu0
    %v586 = vadd.f32 0.0, %v585
    %v587 = vpop.f32.mrb[0].mxu0
    %v588 = vpop.f32.mrb[0].mxu0
    %589 = vdwg.mxu0
    %v590 = vadd.f32 %v545, %v584
    %v591 = vxor.u32 %v590, 2147483648
    %v592 = vmul.f32 %v591, 1.442695
    %v593 = vpow.pop %v592
    %v594 = vadd.f32 %v593, 1.0
    %v595 = vrcp.pop %v594
    %v596 = vmul.f32 1.0, %v595
    %v597 = vadd.f32 %v546, %v586
    %v598 = vxor.u32 %v597, 2147483648
    %v599 = vmul.f32 %v598, 1.442695
    %v600 = vpow.pop %v599
    %v601 = vadd.f32 %v600, 1.0
    %v602 = vrcp.pop %v601
    %v603 = vmul.f32 1.0, %v602
    %v604 = vmul.f32 %v603, %v541
    %v605 = vpack.c.bf16 %v604, %v604
    %606 = vmatprep.subr.bf16.mxu0 0
    %607 = vmatpush1.bf16.msra.mxu0 %v424
    %608 = vmatprep.subr.bf16.mxu0 0
    %609 = vmatpush1.bf16.msra.mxu0 %v425
    %610 = vmatprep.subr.bf16.mxu0 0
    %611 = vmatpush1.bf16.msra.mxu0 %v426
    %612 = vmatprep.subr.bf16.mxu0 0
    %613 = vmatpush1.bf16.msra.mxu0 %v427
    %614 = vmatprep.subr.bf16.mxu0 0
    %615 = vmatpush1.bf16.msra.mxu0 %v428
    %616 = vmatprep.subr.bf16.mxu0 0
    %617 = vmatpush1.bf16.msra.mxu0 %v429
    %618 = vmatprep.subr.bf16.mxu0 0
    %619 = vmatpush1.bf16.msra.mxu0 %v430
    %620 = vmatprep.subr.bf16.mxu0 0
    %621 = vmatpush1.bf16.msra.mxu0 %v431
    %622 = vmatprep.subr.bf16.mxu0 0
    %623 = vmatpush1.bf16.msra.mxu0 0
    %624 = vmatprep.subr.bf16.mxu0 0
    %625 = vmatpush1.bf16.msra.mxu0 0
    %626 = vmatprep.subr.bf16.mxu0 0
    %627 = vmatpush1.bf16.msra.mxu0 0
    %628 = vmatprep.subr.bf16.mxu0 0
    %629 = vmatpush1.bf16.msra.mxu0 0
    %630 = vmatprep.subr.bf16.mxu0 0
    %631 = vmatpush1.bf16.msra.mxu0 0
    %632 = vmatprep.subr.bf16.mxu0 0
    %633 = vmatpush1.bf16.msra.mxu0 0
    %634 = vmatprep.subr.bf16.mxu0 0
    %635 = vmatpush1.bf16.msra.mxu0 0
    %636 = vmatprep.subr.bf16.mxu0 0
    %637 = vmatpush1.bf16.msra.mxu0 0
    %638 = vmatprep.mubr.bf16.mxu0 0
    %639 = vmatmul.mubr.bf16.gmra.mrb[0].mxu0 %v605
    %v640 = vpop.f32.mrb[0].mxu0
    %v641 = vadd.f32 0.0, %v640
    %v642 = vpop.f32.mrb[0].mxu0
    %v643 = vpop.f32.mrb[0].mxu0
    %v644 = vpop.f32.mrb[0].mxu0
    %645 = vdwg.mxu0
    %v646 = vadd.f32 %v547, %v641
    %v647 = vtanh.pop %v646
    %v648 = vsub.f32 %v647, %v541
    %v649 = vmul.f32 %v596, %v648
    %v650 = vadd.f32 %v541, %v649
    %s651 = smul.u32 2, 3
    %s652 = smul.addr %s651, 8
    %s653 = scalar_lea.vmem [#allocation6], %s652
    %v654 = vld [vmem:[%s653] sm:$0xff]
    %v655 = vld [vmem:[%s653 + $0x8] sm:$0xff]
    %v656 = vld [vmem:[%s653 + $0x10] sm:$0xff]
    %v657 = vpack.c.bf16 %v650, %v650
    %658 = vmatprep.subr.bf16.mxu0 %v409
    %659 = vmatpush1.bf16.msra.mxu0 %v408
    %660 = vmatprep.subr.bf16.mxu0 %v411
    %661 = vmatpush1.bf16.msra.mxu0 %v410
    %662 = vmatprep.subr.bf16.mxu0 %v413
    %663 = vmatpush1.bf16.msra.mxu0 %v412
    %664 = vmatprep.subr.bf16.mxu0 %v415
    %665 = vmatpush1.bf16.msra.mxu0 %v414
    %666 = vmatprep.subr.bf16.mxu0 %v417
    %667 = vmatpush1.bf16.msra.mxu0 %v416
    %668 = vmatprep.subr.bf16.mxu0 %v419
    %669 = vmatpush1.bf16.msra.mxu0 %v418
    %670 = vmatprep.subr.bf16.mxu0 %v421
    %671 = vmatpush1.bf16.msra.mxu0 %v420
    %672 = vmatprep.subr.bf16.mxu0 %v423
    %673 = vmatpush1.bf16.msra.mxu0 %v422
    %674 = vmatprep.subr.bf16.mxu0 0
    %675 = vmatpush1.bf16.msra.mxu0 0
    %676 = vmatprep.subr.bf16.mxu0 0
    %677 = vmatpush1.bf16.msra.mxu0 0
    %678 = vmatprep.subr.bf16.mxu0 0
    %679 = vmatpush1.bf16.msra.mxu0 0
    %680 = vmatprep.subr.bf16.mxu0 0
    %681 = vmatpush1.bf16.msra.mxu0 0
    %682 = vmatprep.subr.bf16.mxu0 0
    %683 = vmatpush1.bf16.msra.mxu0 0
    %684 = vmatprep.subr.bf16.mxu0 0
    %685 = vmatpush1.bf16.msra.mxu0 0
    %686 = vmatprep.subr.bf16.mxu0 0
    %687 = vmatpush1.bf16.msra.mxu0 0
    %688 = vmatprep.subr.bf16.mxu0 0
    %689 = vmatpush1.bf16.msra.mxu0 0
    %690 = vmatprep.mubr.bf16.mxu0 0
    %691 = vmatmul.mubr.bf16.gmra.mrb[0].mxu0 %v657
    %v692 = vpop.f32.mrb[0].mxu0
    %v693 = vadd.f32 0.0, %v692
    %v694 = vpop.f32.mrb[0].mxu0
    %v695 = vadd.f32 0.0, %v694
    %v696 = vpop.f32.mrb[0].mxu0
    %v697 = vpop.f32.mrb[0].mxu0
    %698 = vdwg.mxu0
    %v699 = vadd.f32 %v654, %v693
    %v700 = vxor.u32 %v699, 2147483648
    %v701 = vmul.f32 %v700, 1.442695
    %v702 = vpow.pop %v701
    %v703 = vadd.f32 %v702, 1.0
    %v704 = vrcp.pop %v703
    %v705 = vmul.f32 1.0, %v704
    %v706 = vadd.f32 %v655, %v695
    %v707 = vxor.u32 %v706, 2147483648
    %v708 = vmul.f32 %v707, 1.442695
    %v709 = vpow.pop %v708
    %v710 = vadd.f32 %v709, 1.0
    %v711 = vrcp.pop %v710
    %v712 = vmul.f32 1.0, %v711
    %v713 = vmul.f32 %v712, %v650
    %v714 = vpack.c.bf16 %v713, %v713
    %715 = vmatprep.subr.bf16.mxu0 0
    %716 = vmatpush1.bf16.msra.mxu0 %v424
    %717 = vmatprep.subr.bf16.mxu0 0
    %718 = vmatpush1.bf16.msra.mxu0 %v425
    %719 = vmatprep.subr.bf16.mxu0 0
    %720 = vmatpush1.bf16.msra.mxu0 %v426
    %721 = vmatprep.subr.bf16.mxu0 0
    %722 = vmatpush1.bf16.msra.mxu0 %v427
    %723 = vmatprep.subr.bf16.mxu0 0
    %724 = vmatpush1.bf16.msra.mxu0 %v428
    %725 = vmatprep.subr.bf16.mxu0 0
    %726 = vmatpush1.bf16.msra.mxu0 %v429
    %727 = vmatprep.subr.bf16.mxu0 0
    %728 = vmatpush1.bf16.msra.mxu0 %v430
    %729 = vmatprep.subr.bf16.mxu0 0
    %730 = vmatpush1.bf16.msra.mxu0 %v431
    %731 = vmatprep.subr.bf16.mxu0 0
    %732 = vmatpush1.bf16.msra.mxu0 0
    %733 = vmatprep.subr.bf16.mxu0 0
    %734 = vmatpush1.bf16.msra.mxu0 0
    %735 = vmatprep.subr.bf16.mxu0 0
    %736 = vmatpush1.bf16.msra.mxu0 0
    %737 = vmatprep.subr.bf16.mxu0 0
    %738 = vmatpush1.bf16.msra.mxu0 0
    %739 = vmatprep.subr.bf16.mxu0 0
    %740 = vmatpush1.bf16.msra.mxu0 0
    %741 = vmatprep.subr.bf16.mxu0 0
    %742 = vmatpush1.bf16.msra.mxu0 0
    %743 = vmatprep.subr.bf16.mxu0 0
    %744 = vmatpush1.bf16.msra.mxu0 0
    %745 = vmatprep.subr.bf16.mxu0 0
    %746 = vmatpush1.bf16.msra.mxu0 0
    %747 = vmatprep.mubr.bf16.mxu0 0
    %748 = vmatmul.mubr.bf16.gmra.mrb[0].mxu0 %v714
    %v749 = vpop.f32.mrb[0].mxu0
    %v750 = vadd.f32 0.0, %v749
    %v751 = vpop.f32.mrb[0].mxu0
    %v752 = vpop.f32.mrb[0].mxu0
    %v753 = vpop.f32.mrb[0].mxu0
    %754 = vdwg.mxu0
    %v755 = vadd.f32 %v656, %v750
    %v756 = vtanh.pop %v755
    %v757 = vsub.f32 %v756, %v650
    %v758 = vmul.f32 %v705, %v757
    %v759 = vadd.f32 %v650, %v758
    %s760 = smul.u32 3, 3
    %s761 = smul.addr %s760, 8
    %s762 = scalar_lea.vmem [#allocation6], %s761
    %v763 = vld [vmem:[%s762] sm:$0xff]
    %v764 = vld [vmem:[%s762 + $0x8] sm:$0xff]
    %v765 = vld [vmem:[%s762 + $0x10] sm:$0xff]
    %v766 = vpack.c.bf16 %v759, %v759
    %767 = vmatprep.subr.bf16.mxu0 %v409
    %768 = vmatpush1.bf16.msra.mxu0 %v408
    %769 = vmatprep.subr.bf16.mxu0 %v411
    %770 = vmatpush1.bf16.msra.mxu0 %v410
    %771 = vmatprep.subr.bf16.mxu0 %v413
    %772 = vmatpush1.bf16.msra.mxu0 %v412
    %773 = vmatprep.subr.bf16.mxu0 %v415
    %774 = vmatpush1.bf16.msra.mxu0 %v414
    %775 = vmatprep.subr.bf16.mxu0 %v417
    %776 = vmatpush1.bf16.msra.mxu0 %v416
    %777 = vmatprep.subr.bf16.mxu0 %v419
    %778 = vmatpush1.bf16.msra.mxu0 %v418
    %779 = vmatprep.subr.bf16.mxu0 %v421
    %780 = vmatpush1.bf16.msra.mxu0 %v420
    %781 = vmatprep.subr.bf16.mxu0 %v423
    %782 = vmatpush1.bf16.msra.mxu0 %v422
    %783 = vmatprep.subr.bf16.mxu0 0
    %784 = vmatpush1.bf16.msra.mxu0 0
    %785 = vmatprep.subr.bf16.mxu0 0
    %786 = vmatpush1.bf16.msra.mxu0 0
    %787 = vmatprep.subr.bf16.mxu0 0
    %788 = vmatpush1.bf16.msra.mxu0 0
    %789 = vmatprep.subr.bf16.mxu0 0
    %790 = vmatpush1.bf16.msra.mxu0 0
    %791 = vmatprep.subr.bf16.mxu0 0
    %792 = vmatpush1.bf16.msra.mxu0 0
    %793 = vmatprep.subr.bf16.mxu0 0
    %794 = vmatpush1.bf16.msra.mxu0 0
    %795 = vmatprep.subr.bf16.mxu0 0
    %796 = vmatpush1.bf16.msra.mxu0 0
    %797 = vmatprep.subr.bf16.mxu0 0
    %798 = vmatpush1.bf16.msra.mxu0 0
    %799 = vmatprep.mubr.bf16.mxu0 0
    %800 = vmatmul.mubr.bf16.gmra.mrb[0].mxu0 %v766
    %v801 = vpop.f32.mrb[0].mxu0
    %v802 = vadd.f32 0.0, %v801
    %v803 = vpop.f32.mrb[0].mxu0
    %v804 = vadd.f32 0.0, %v803
    %v805 = vpop.f32.mrb[0].mxu0
    %v806 = vpop.f32.mrb[0].mxu0
    %807 = vdwg.mxu0
    %v808 = vadd.f32 %v763, %v802
    %v809 = vxor.u32 %v808, 2147483648
    %v810 = vmul.f32 %v809, 1.442695
    %v811 = vpow.pop %v810
    %v812 = vadd.f32 %v811, 1.0
    %v813 = vrcp.pop %v812
    %v814 = vmul.f32 1.0, %v813
    %v815 = vadd.f32 %v764, %v804
    %v816 = vxor.u32 %v815, 2147483648
    %v817 = vmul.f32 %v816, 1.442695
    %v818 = vpow.pop %v817
    %v819 = vadd.f32 %v818, 1.0
    %v820 = vrcp.pop %v819
    %v821 = vmul.f32 1.0, %v820
    %v822 = vmul.f32 %v821, %v759
    %v823 = vpack.c.bf16 %v822, %v822
    %824 = vmatprep.subr.bf16.mxu0 0
    %825 = vmatpush1.bf16.msra.mxu0 %v424
    %826 = vmatprep.subr.bf16.mxu0 0
    %827 = vmatpush1.bf16.msra.mxu0 %v425
    %828 = vmatprep.subr.bf16.mxu0 0
    %829 = vmatpush1.bf16.msra.mxu0 %v426
    %830 = vmatprep.subr.bf16.mxu0 0
    %831 = vmatpush1.bf16.msra.mxu0 %v427
    %832 = vmatprep.subr.bf16.mxu0 0
    %833 = vmatpush1.bf16.msra.mxu0 %v428
    %834 = vmatprep.subr.bf16.mxu0 0
    %835 = vmatpush1.bf16.msra.mxu0 %v429
    %836 = vmatprep.subr.bf16.mxu0 0
    %837 = vmatpush1.bf16.msra.mxu0 %v430
    %838 = vmatprep.subr.bf16.mxu0 0
    %839 = vmatpush1.bf16.msra.mxu0 %v431
    %840 = vmatprep.subr.bf16.mxu0 0
    %841 = vmatpush1.bf16.msra.mxu0 0
    %842 = vmatprep.subr.bf16.mxu0 0
    %843 = vmatpush1.bf16.msra.mxu0 0
    %844 = vmatprep.subr.bf16.mxu0 0
    %845 = vmatpush1.bf16.msra.mxu0 0
    %846 = vmatprep.subr.bf16.mxu0 0
    %847 = vmatpush1.bf16.msra.mxu0 0
    %848 = vmatprep.subr.bf16.mxu0 0
    %849 = vmatpush1.bf16.msra.mxu0 0
    %850 = vmatprep.subr.bf16.mxu0 0
    %851 = vmatpush1.bf16.msra.mxu0 0
    %852 = vmatprep.subr.bf16.mxu0 0
    %853 = vmatpush1.bf16.msra.mxu0 0
    %854 = vmatprep.subr.bf16.mxu0 0
    %855 = vmatpush1.bf16.msra.mxu0 0
    %856 = vmatprep.mubr.bf16.mxu0 0
    %857 = vmatmul.mubr.bf16.gmra.mrb[0].mxu0 %v823
    %v858 = vpop.f32.mrb[0].mxu0
    %v859 = vadd.f32 0.0, %v858
    %v860 = vpop.f32.mrb[0].mxu0
    %v861 = vpop.f32.mrb[0].mxu0
    %v862 = vpop.f32.mrb[0].mxu0
    %863 = vdwg.mxu0
    %v864 = vadd.f32 %v765, %v859
    %v865 = vtanh.pop %v864
    %v866 = vsub.f32 %v865, %v759
    %v867 = vmul.f32 %v814, %v866
    %v868 = vadd.f32 %v759, %v867
    %s869 = smul.u32 4, 3
    %s870 = smul.addr %s869, 8
    %s871 = scalar_lea.vmem [#allocation6], %s870
    %v872 = vld [vmem:[%s871] sm:$0xff]
    %v873 = vld [vmem:[%s871 + $0x8] sm:$0xff]
    %v874 = vld [vmem:[%s871 + $0x10] sm:$0xff]
    %v875 = vpack.c.bf16 %v868, %v868
    %876 = vmatprep.subr.bf16.mxu0 %v409
    %877 = vmatpush1.bf16.msra.mxu0 %v408
    %878 = vmatprep.subr.bf16.mxu0 %v411
    %879 = vmatpush1.bf16.msra.mxu0 %v410
    %880 = vmatprep.subr.bf16.mxu0 %v413
    %881 = vmatpush1.bf16.msra.mxu0 %v412
    %882 = vmatprep.subr.bf16.mxu0 %v415
    %883 = vmatpush1.bf16.msra.mxu0 %v414
    %884 = vmatprep.subr.bf16.mxu0 %v417
    %885 = vmatpush1.bf16.msra.mxu0 %v416
    %886 = vmatprep.subr.bf16.mxu0 %v419
    %887 = vmatpush1.bf16.msra.mxu0 %v418
    %888 = vmatprep.subr.bf16.mxu0 %v421
    %889 = vmatpush1.bf16.msra.mxu0 %v420
    %890 = vmatprep.subr.bf16.mxu0 %v423
    %891 = vmatpush1.bf16.msra.mxu0 %v422
    %892 = vmatprep.subr.bf16.mxu0 0
    %893 = vmatpush1.bf16.msra.mxu0 0
    %894 = vmatprep.subr.bf16.mxu0 0
    %895 = vmatpush1.bf16.msra.mxu0 0
    %896 = vmatprep.subr.bf16.mxu0 0
    %897 = vmatpush1.bf16.msra.mxu0 0
    %898 = vmatprep.subr.bf16.mxu0 0
    %899 = vmatpush1.bf16.msra.mxu0 0
    %900 = vmatprep.subr.bf16.mxu0 0
    %901 = vmatpush1.bf16.msra.mxu0 0
    %902 = vmatprep.subr.bf16.mxu0 0
    %903 = vmatpush1.bf16.msra.mxu0 0
    %904 = vmatprep.subr.bf16.mxu0 0
    %905 = vmatpush1.bf16.msra.mxu0 0
    %906 = vmatprep.subr.bf16.mxu0 0
    %907 = vmatpush1.bf16.msra.mxu0 0
    %908 = vmatprep.mubr.bf16.mxu0 0
    %909 = vmatmul.mubr.bf16.gmra.mrb[0].mxu0 %v875
    %v910 = vpop.f32.mrb[0].mxu0
    %v911 = vadd.f32 0.0, %v910
    %v912 = vpop.f32.mrb[0].mxu0
    %v913 = vadd.f32 0.0, %v912
    %v914 = vpop.f32.mrb[0].mxu0
    %v915 = vpop.f32.mrb[0].mxu0
    %916 = vdwg.mxu0
    %v917 = vadd.f32 %v872, %v911
    %v918 = vxor.u32 %v917, 2147483648
    %v919 = vmul.f32 %v918, 1.442695
    %v920 = vpow.pop %v919
    %v921 = vadd.f32 %v920, 1.0
    %v922 = vrcp.pop %v921
    %v923 = vmul.f32 1.0, %v922
    %v924 = vadd.f32 %v873, %v913
    %v925 = vxor.u32 %v924, 2147483648
    %v926 = vmul.f32 %v925, 1.442695
    %v927 = vpow.pop %v926
    %v928 = vadd.f32 %v927, 1.0
    %v929 = vrcp.pop %v928
    %v930 = vmul.f32 1.0, %v929
    %v931 = vmul.f32 %v930, %v868
    %v932 = vpack.c.bf16 %v931, %v931
    %933 = vmatprep.subr.bf16.mxu0 0
    %934 = vmatpush1.bf16.msra.mxu0 %v424
    %935 = vmatprep.subr.bf16.mxu0 0
    %936 = vmatpush1.bf16.msra.mxu0 %v425
    %937 = vmatprep.subr.bf16.mxu0 0
    %938 = vmatpush1.bf16.msra.mxu0 %v426
    %939 = vmatprep.subr.bf16.mxu0 0
    %940 = vmatpush1.bf16.msra.mxu0 %v427
    %941 = vmatprep.subr.bf16.mxu0 0
    %942 = vmatpush1.bf16.msra.mxu0 %v428
    %943 = vmatprep.subr.bf16.mxu0 0
    %944 = vmatpush1.bf16.msra.mxu0 %v429
    %945 = vmatprep.subr.bf16.mxu0 0
    %946 = vmatpush1.bf16.msra.mxu0 %v430
    %947 = vmatprep.subr.bf16.mxu0 0
    %948 = vmatpush1.bf16.msra.mxu0 %v431
    %949 = vmatprep.subr.bf16.mxu0 0
    %950 = vmatpush1.bf16.msra.mxu0 0
    %951 = vmatprep.subr.bf16.mxu0 0
    %952 = vmatpush1.bf16.msra.mxu0 0
    %953 = vmatprep.subr.bf16.mxu0 0
    %954 = vmatpush1.bf16.msra.mxu0 0
    %955 = vmatprep.subr.bf16.mxu0 0
    %956 = vmatpush1.bf16.msra.mxu0 0
    %957 = vmatprep.subr.bf16.mxu0 0
    %958 = vmatpush1.bf16.msra.mxu0 0
    %959 = vmatprep.subr.bf16.mxu0 0
    %960 = vmatpush1.bf16.msra.mxu0 0
    %961 = vmatprep.subr.bf16.mxu0 0
    %962 = vmatpush1.bf16.msra.mxu0 0
    %963 = vmatprep.subr.bf16.mxu0 0
    %964 = vmatpush1.bf16.msra.mxu0 0
    %965 = vmatprep.mubr.bf16.mxu0 0
    %966 = vmatmul.mubr.bf16.gmra.mrb[0].mxu0 %v932
    %v967 = vpop.f32.mrb[0].mxu0
    %v968 = vadd.f32 0.0, %v967
    %v969 = vpop.f32.mrb[0].mxu0
    %v970 = vpop.f32.mrb[0].mxu0
    %v971 = vpop.f32.mrb[0].mxu0
    %972 = vdwg.mxu0
    %v973 = vadd.f32 %v874, %v968
    %v974 = vtanh.pop %v973
    %v975 = vsub.f32 %v974, %v868
    %v976 = vmul.f32 %v923, %v975
    %v977 = vadd.f32 %v868, %v976
    %s978 = smul.u32 5, 3
    %s979 = smul.addr %s978, 8
    %s980 = scalar_lea.vmem [#allocation6], %s979
    %v981 = vld [vmem:[%s980] sm:$0xff]
    %v982 = vld [vmem:[%s980 + $0x8] sm:$0xff]
    %v983 = vld [vmem:[%s980 + $0x10] sm:$0xff]
    %v984 = vpack.c.bf16 %v977, %v977
    %985 = vmatprep.subr.bf16.mxu0 %v409
    %986 = vmatpush1.bf16.msra.mxu0 %v408
    %987 = vmatprep.subr.bf16.mxu0 %v411
    %988 = vmatpush1.bf16.msra.mxu0 %v410
    %989 = vmatprep.subr.bf16.mxu0 %v413
    %990 = vmatpush1.bf16.msra.mxu0 %v412
    %991 = vmatprep.subr.bf16.mxu0 %v415
    %992 = vmatpush1.bf16.msra.mxu0 %v414
    %993 = vmatprep.subr.bf16.mxu0 %v417
    %994 = vmatpush1.bf16.msra.mxu0 %v416
    %995 = vmatprep.subr.bf16.mxu0 %v419
    %996 = vmatpush1.bf16.msra.mxu0 %v418
    %997 = vmatprep.subr.bf16.mxu0 %v421
    %998 = vmatpush1.bf16.msra.mxu0 %v420
    %999 = vmatprep.subr.bf16.mxu0 %v423
    %1000 = vmatpush1.bf16.msra.mxu0 %v422
    %1001 = vmatprep.subr.bf16.mxu0 0
    %1002 = vmatpush1.bf16.msra.mxu0 0
    %1003 = vmatprep.subr.bf16.mxu0 0
    %1004 = vmatpush1.bf16.msra.mxu0 0
    %1005 = vmatprep.subr.bf16.mxu0 0
    %1006 = vmatpush1.bf16.msra.mxu0 0
    %1007 = vmatprep.subr.bf16.mxu0 0
    %1008 = vmatpush1.bf16.msra.mxu0 0
    %1009 = vmatprep.subr.bf16.mxu0 0
    %1010 = vmatpush1.bf16.msra.mxu0 0
    %1011 = vmatprep.subr.bf16.mxu0 0
    %1012 = vmatpush1.bf16.msra.mxu0 0
    %1013 = vmatprep.subr.bf16.mxu0 0
    %1014 = vmatpush1.bf16.msra.mxu0 0
    %1015 = vmatprep.subr.bf16.mxu0 0
    %1016 = vmatpush1.bf16.msra.mxu0 0
    %1017 = vmatprep.mubr.bf16.mxu0 0
    %1018 = vmatmul.mubr.bf16.gmra.mrb[0].mxu0 %v984
    %v1019 = vpop.f32.mrb[0].mxu0
    %v1020 = vadd.f32 0.0, %v1019
    %v1021 = vpop.f32.mrb[0].mxu0
    %v1022 = vadd.f32 0.0, %v1021
    %v1023 = vpop.f32.mrb[0].mxu0
    %v1024 = vpop.f32.mrb[0].mxu0
    %1025 = vdwg.mxu0
    %v1026 = vadd.f32 %v981, %v1020
    %v1027 = vxor.u32 %v1026, 2147483648
    %v1028 = vmul.f32 %v1027, 1.442695
    %v1029 = vpow.pop %v1028
    %v1030 = vadd.f32 %v1029, 1.0
    %v1031 = vrcp.pop %v1030
    %v1032 = vmul.f32 1.0, %v1031
    %v1033 = vadd.f32 %v982, %v1022
    %v1034 = vxor.u32 %v1033, 2147483648
    %v1035 = vmul.f32 %v1034, 1.442695
    %v1036 = vpow.pop %v1035
    %v1037 = vadd.f32 %v1036, 1.0
    %v1038 = vrcp.pop %v1037
    %v1039 = vmul.f32 1.0, %v1038
    %v1040 = vmul.f32 %v1039, %v977
    %v1041 = vpack.c.bf16 %v1040, %v1040
    %1042 = vmatprep.subr.bf16.mxu0 0
    %1043 = vmatpush1.bf16.msra.mxu0 %v424
    %1044 = vmatprep.subr.bf16.mxu0 0
    %1045 = vmatpush1.bf16.msra.mxu0 %v425
    %1046 = vmatprep.subr.bf16.mxu0 0
    %1047 = vmatpush1.bf16.msra.mxu0 %v426
    %1048 = vmatprep.subr.bf16.mxu0 0
    %1049 = vmatpush1.bf16.msra.mxu0 %v427
    %1050 = vmatprep.subr.bf16.mxu0 0
    %1051 = vmatpush1.bf16.msra.mxu0 %v428
    %1052 = vmatprep.subr.bf16.mxu0 0
    %1053 = vmatpush1.bf16.msra.mxu0 %v429
    %1054 = vmatprep.subr.bf16.mxu0 0
    %1055 = vmatpush1.bf16.msra.mxu0 %v430
    %1056 = vmatprep.subr.bf16.mxu0 0
    %1057 = vmatpush1.bf16.msra.mxu0 %v431
    %1058 = vmatprep.subr.bf16.mxu0 0
    %1059 = vmatpush1.bf16.msra.mxu0 0
    %1060 = vmatprep.subr.bf16.mxu0 0
    %1061 = vmatpush1.bf16.msra.mxu0 0
    %1062 = vmatprep.subr.bf16.mxu0 0
    %1063 = vmatpush1.bf16.msra.mxu0 0
    %1064 = vmatprep.subr.bf16.mxu0 0
    %1065 = vmatpush1.bf16.msra.mxu0 0
    %1066 = vmatprep.subr.bf16.mxu0 0
    %1067 = vmatpush1.bf16.msra.mxu0 0
    %1068 = vmatprep.subr.bf16.mxu0 0
    %1069 = vmatpush1.bf16.msra.mxu0 0
    %1070 = vmatprep.subr.bf16.mxu0 0
    %1071 = vmatpush1.bf16.msra.mxu0 0
    %1072 = vmatprep.subr.bf16.mxu0 0
    %1073 = vmatpush1.bf16.msra.mxu0 0
    %1074 = vmatprep.mubr.bf16.mxu0 0
    %1075 = vmatmul.mubr.bf16.gmra.mrb[0].mxu0 %v1041
    %v1076 = vpop.f32.mrb[0].mxu0
    %v1077 = vadd.f32 0.0, %v1076
    %v1078 = vpop.f32.mrb[0].mxu0
    %v1079 = vpop.f32.mrb[0].mxu0
    %v1080 = vpop.f32.mrb[0].mxu0
    %1081 = vdwg.mxu0
    %v1082 = vadd.f32 %v983, %v1077
    %v1083 = vtanh.pop %v1082
    %v1084 = vsub.f32 %v1083, %v977
    %v1085 = vmul.f32 %v1032, %v1084
    %v1086 = vadd.f32 %v977, %v1085
    %s1087 = smul.u32 6, 3
    %s1088 = smul.addr %s1087, 8
    %s1089 = scalar_lea.vmem [#allocation6], %s1088
    %v1090 = vld [vmem:[%s1089] sm:$0xff]
    %v1091 = vld [vmem:[%s1089 + $0x8] sm:$0xff]
    %v1092 = vld [vmem:[%s1089 + $0x10] sm:$0xff]
    %v1093 = vpack.c.bf16 %v1086, %v1086
    %1094 = vmatprep.subr.bf16.mxu0 %v409
    %1095 = vmatpush1.bf16.msra.mxu0 %v408
    %1096 = vmatprep.subr.bf16.mxu0 %v411
    %1097 = vmatpush1.bf16.msra.mxu0 %v410
    %1098 = vmatprep.subr.bf16.mxu0 %v413
    %1099 = vmatpush1.bf16.msra.mxu0 %v412
    %1100 = vmatprep.subr.bf16.mxu0 %v415
    %1101 = vmatpush1.bf16.msra.mxu0 %v414
    %1102 = vmatprep.subr.bf16.mxu0 %v417
    %1103 = vmatpush1.bf16.msra.mxu0 %v416
    %1104 = vmatprep.subr.bf16.mxu0 %v419
    %1105 = vmatpush1.bf16.msra.mxu0 %v418
    %1106 = vmatprep.subr.bf16.mxu0 %v421
    %1107 = vmatpush1.bf16.msra.mxu0 %v420
    %1108 = vmatprep.subr.bf16.mxu0 %v423
    %1109 = vmatpush1.bf16.msra.mxu0 %v422
    %1110 = vmatprep.subr.bf16.mxu0 0
    %1111 = vmatpush1.bf16.msra.mxu0 0
    %1112 = vmatprep.subr.bf16.mxu0 0
    %1113 = vmatpush1.bf16.msra.mxu0 0
    %1114 = vmatprep.subr.bf16.mxu0 0
    %1115 = vmatpush1.bf16.msra.mxu0 0
    %1116 = vmatprep.subr.bf16.mxu0 0
    %1117 = vmatpush1.bf16.msra.mxu0 0
    %1118 = vmatprep.subr.bf16.mxu0 0
    %1119 = vmatpush1.bf16.msra.mxu0 0
    %1120 = vmatprep.subr.bf16.mxu0 0
    %1121 = vmatpush1.bf16.msra.mxu0 0
    %1122 = vmatprep.subr.bf16.mxu0 0
    %1123 = vmatpush1.bf16.msra.mxu0 0
    %1124 = vmatprep.subr.bf16.mxu0 0
    %1125 = vmatpush1.bf16.msra.mxu0 0
    %1126 = vmatprep.mubr.bf16.mxu0 0
    %1127 = vmatmul.mubr.bf16.gmra.mrb[0].mxu0 %v1093
    %v1128 = vpop.f32.mrb[0].mxu0
    %v1129 = vadd.f32 0.0, %v1128
    %v1130 = vpop.f32.mrb[0].mxu0
    %v1131 = vadd.f32 0.0, %v1130
    %v1132 = vpop.f32.mrb[0].mxu0
    %v1133 = vpop.f32.mrb[0].mxu0
    %1134 = vdwg.mxu0
    %v1135 = vadd.f32 %v1090, %v1129
    %v1136 = vxor.u32 %v1135, 2147483648
    %v1137 = vmul.f32 %v1136, 1.442695
    %v1138 = vpow.pop %v1137
    %v1139 = vadd.f32 %v1138, 1.0
    %v1140 = vrcp.pop %v1139
    %v1141 = vmul.f32 1.0, %v1140
    %v1142 = vadd.f32 %v1091, %v1131
    %v1143 = vxor.u32 %v1142, 2147483648
    %v1144 = vmul.f32 %v1143, 1.442695
    %v1145 = vpow.pop %v1144
    %v1146 = vadd.f32 %v1145, 1.0
    %v1147 = vrcp.pop %v1146
    %v1148 = vmul.f32 1.0, %v1147
    %v1149 = vmul.f32 %v1148, %v1086
    %v1150 = vpack.c.bf16 %v1149, %v1149
    %1151 = vmatprep.subr.bf16.mxu0 0
    %1152 = vmatpush1.bf16.msra.mxu0 %v424
    %1153 = vmatprep.subr.bf16.mxu0 0
    %1154 = vmatpush1.bf16.msra.mxu0 %v425
    %1155 = vmatprep.subr.bf16.mxu0 0
    %1156 = vmatpush1.bf16.msra.mxu0 %v426
    %1157 = vmatprep.subr.bf16.mxu0 0
    %1158 = vmatpush1.bf16.msra.mxu0 %v427
    %1159 = vmatprep.subr.bf16.mxu0 0
    %1160 = vmatpush1.bf16.msra.mxu0 %v428
    %1161 = vmatprep.subr.bf16.mxu0 0
    %1162 = vmatpush1.bf16.msra.mxu0 %v429
    %1163 = vmatprep.subr.bf16.mxu0 0
    %1164 = vmatpush1.bf16.msra.mxu0 %v430
    %1165 = vmatprep.subr.bf16.mxu0 0
    %1166 = vmatpush1.bf16.msra.mxu0 %v431
    %1167 = vmatprep.subr.bf16.mxu0 0
    %1168 = vmatpush1.bf16.msra.mxu0 0
    %1169 = vmatprep.subr.bf16.mxu0 0
    %1170 = vmatpush1.bf16.msra.mxu0 0
    %1171 = vmatprep.subr.bf16.mxu0 0
    %1172 = vmatpush1.bf16.msra.mxu0 0
    %1173 = vmatprep.subr.bf16.mxu0 0
    %1174 = vmatpush1.bf16.msra.mxu0 0
    %1175 = vmatprep.subr.bf16.mxu0 0
    %1176 = vmatpush1.bf16.msra.mxu0 0
    %1177 = vmatprep.subr.bf16.mxu0 0
    %1178 = vmatpush1.bf16.msra.mxu0 0
    %1179 = vmatprep.subr.bf16.mxu0 0
    %1180 = vmatpush1.bf16.msra.mxu0 0
    %1181 = vmatprep.subr.bf16.mxu0 0
    %1182 = vmatpush1.bf16.msra.mxu0 0
    %1183 = vmatprep.mubr.bf16.mxu0 0
    %1184 = vmatmul.mubr.bf16.gmra.mrb[0].mxu0 %v1150
    %v1185 = vpop.f32.mrb[0].mxu0
    %v1186 = vadd.f32 0.0, %v1185
    %v1187 = vpop.f32.mrb[0].mxu0
    %v1188 = vpop.f32.mrb[0].mxu0
    %v1189 = vpop.f32.mrb[0].mxu0
    %1190 = vdwg.mxu0
    %v1191 = vadd.f32 %v1092, %v1186
    %v1192 = vtanh.pop %v1191
    %v1193 = vsub.f32 %v1192, %v1086
    %v1194 = vmul.f32 %v1141, %v1193
    %v1195 = vadd.f32 %v1086, %v1194
    %s1196 = smul.u32 7, 3
    %s1197 = smul.addr %s1196, 8
    %s1198 = scalar_lea.vmem [#allocation6], %s1197
    %v1199 = vld [vmem:[%s1198] sm:$0xff]
    %v1200 = vld [vmem:[%s1198 + $0x8] sm:$0xff]
    %v1201 = vld [vmem:[%s1198 + $0x10] sm:$0xff]
    %v1202 = vpack.c.bf16 %v1195, %v1195
    %1203 = vmatprep.subr.bf16.mxu0 %v409
    %1204 = vmatpush1.bf16.msra.mxu0 %v408
    %1205 = vmatprep.subr.bf16.mxu0 %v411
    %1206 = vmatpush1.bf16.msra.mxu0 %v410
    %1207 = vmatprep.subr.bf16.mxu0 %v413
    %1208 = vmatpush1.bf16.msra.mxu0 %v412
    %1209 = vmatprep.subr.bf16.mxu0 %v415
    %1210 = vmatpush1.bf16.msra.mxu0 %v414
    %1211 = vmatprep.subr.bf16.mxu0 %v417
    %1212 = vmatpush1.bf16.msra.mxu0 %v416
    %1213 = vmatprep.subr.bf16.mxu0 %v419
    %1214 = vmatpush1.bf16.msra.mxu0 %v418
    %1215 = vmatprep.subr.bf16.mxu0 %v421
    %1216 = vmatpush1.bf16.msra.mxu0 %v420
    %1217 = vmatprep.subr.bf16.mxu0 %v423
    %1218 = vmatpush1.bf16.msra.mxu0 %v422
    %1219 = vmatprep.subr.bf16.mxu0 0
    %1220 = vmatpush1.bf16.msra.mxu0 0
    %1221 = vmatprep.subr.bf16.mxu0 0
    %1222 = vmatpush1.bf16.msra.mxu0 0
    %1223 = vmatprep.subr.bf16.mxu0 0
    %1224 = vmatpush1.bf16.msra.mxu0 0
    %1225 = vmatprep.subr.bf16.mxu0 0
    %1226 = vmatpush1.bf16.msra.mxu0 0
    %1227 = vmatprep.subr.bf16.mxu0 0
    %1228 = vmatpush1.bf16.msra.mxu0 0
    %1229 = vmatprep.subr.bf16.mxu0 0
    %1230 = vmatpush1.bf16.msra.mxu0 0
    %1231 = vmatprep.subr.bf16.mxu0 0
    %1232 = vmatpush1.bf16.msra.mxu0 0
    %1233 = vmatprep.subr.bf16.mxu0 0
    %1234 = vmatpush1.bf16.msra.mxu0 0
    %1235 = vmatprep.mubr.bf16.mxu0 0
    %1236 = vmatmul.mubr.bf16.gmra.mrb[0].mxu0 %v1202
    %v1237 = vpop.f32.mrb[0].mxu0
    %v1238 = vadd.f32 0.0, %v1237
    %v1239 = vpop.f32.mrb[0].mxu0
    %v1240 = vadd.f32 0.0, %v1239
    %v1241 = vpop.f32.mrb[0].mxu0
    %v1242 = vpop.f32.mrb[0].mxu0
    %1243 = vdwg.mxu0
    %v1244 = vadd.f32 %v1199, %v1238
    %v1245 = vxor.u32 %v1244, 2147483648
    %v1246 = vmul.f32 %v1245, 1.442695
    %v1247 = vpow.pop %v1246
    %v1248 = vadd.f32 %v1247, 1.0
    %v1249 = vrcp.pop %v1248
    %v1250 = vmul.f32 1.0, %v1249
    %v1251 = vadd.f32 %v1200, %v1240
    %v1252 = vxor.u32 %v1251, 2147483648
    %v1253 = vmul.f32 %v1252, 1.442695
    %v1254 = vpow.pop %v1253
    %v1255 = vadd.f32 %v1254, 1.0
    %v1256 = vrcp.pop %v1255
    %v1257 = vmul.f32 1.0, %v1256
    %v1258 = vmul.f32 %v1257, %v1195
    %v1259 = vpack.c.bf16 %v1258, %v1258
    %1260 = vmatprep.subr.bf16.mxu0 0
    %1261 = vmatpush1.bf16.msra.mxu0 %v424
    %1262 = vmatprep.subr.bf16.mxu0 0
    %1263 = vmatpush1.bf16.msra.mxu0 %v425
    %1264 = vmatprep.subr.bf16.mxu0 0
    %1265 = vmatpush1.bf16.msra.mxu0 %v426
    %1266 = vmatprep.subr.bf16.mxu0 0
    %1267 = vmatpush1.bf16.msra.mxu0 %v427
    %1268 = vmatprep.subr.bf16.mxu0 0
    %1269 = vmatpush1.bf16.msra.mxu0 %v428
    %1270 = vmatprep.subr.bf16.mxu0 0
    %1271 = vmatpush1.bf16.msra.mxu0 %v429
    %1272 = vmatprep.subr.bf16.mxu0 0
    %1273 = vmatpush1.bf16.msra.mxu0 %v430
    %1274 = vmatprep.subr.bf16.mxu0 0
    %1275 = vmatpush1.bf16.msra.mxu0 %v431
    %1276 = vmatprep.subr.bf16.mxu0 0
    %1277 = vmatpush1.bf16.msra.mxu0 0
    %1278 = vmatprep.subr.bf16.mxu0 0
    %1279 = vmatpush1.bf16.msra.mxu0 0
    %1280 = vmatprep.subr.bf16.mxu0 0
    %1281 = vmatpush1.bf16.msra.mxu0 0
    %1282 = vmatprep.subr.bf16.mxu0 0
    %1283 = vmatpush1.bf16.msra.mxu0 0
    %1284 = vmatprep.subr.bf16.mxu0 0
    %1285 = vmatpush1.bf16.msra.mxu0 0
    %1286 = vmatprep.subr.bf16.mxu0 0
    %1287 = vmatpush1.bf16.msra.mxu0 0
    %1288 = vmatprep.subr.bf16.mxu0 0
    %1289 = vmatpush1.bf16.msra.mxu0 0
    %1290 = vmatprep.subr.bf16.mxu0 0
    %1291 = vmatpush1.bf16.msra.mxu0 0
    %1292 = vmatprep.mubr.bf16.mxu0 0
    %1293 = vmatmul.mubr.bf16.gmra.mrb[0].mxu0 %v1259
    %v1294 = vpop.f32.mrb[0].mxu0
    %v1295 = vadd.f32 0.0, %v1294
    %v1296 = vpop.f32.mrb[0].mxu0
    %v1297 = vpop.f32.mrb[0].mxu0
    %v1298 = vpop.f32.mrb[0].mxu0
    %1299 = vdwg.mxu0
    %v1300 = vadd.f32 %v1201, %v1295
    %v1301 = vtanh.pop %v1300
    %v1302 = vsub.f32 %v1301, %v1195
    %v1303 = vmul.f32 %v1250, %v1302
    %v1304 = vadd.f32 %v1195, %v1303
    %1305 = vst [vmem:[#allocation11] sm:$0xff] %v1304
    // Predicated region
    $region48: #{tpu_custom_call.1} parent=1 // pred_check
      _
    $region49: #{tpu_custom_call.1} parent=1 // pred_check_branch
      %1307 = sbr.rel (0) target = $region51
    $region50: #{tpu_custom_call.1} parent=1 // pred_region
      %s1309 = ssub.s32 128, 128
      %1310 = vsyncadd [#allocation10], %s1309
      %s1312 = sshll.u32 [#allocation11], 4
      %s1313 = int_to_ptr.vmem [resolvable:$true] %s1312
      %1315 = dma.vmem_to_hbm [thread:$0]  %s1313, 128, %s5, [#allocation10]
    $region51: #{tpu_custom_call.1} parent=1 // pred_fallthru
      _
    // Predicated region
    $region52: #{tpu_custom_call.1} parent=1 // pred_check
      _
    $region53: #{tpu_custom_call.1} parent=1 // pred_check_branch
      %1317 = sbr.rel (0) target = $region55
    $region54: #{tpu_custom_call.1} parent=1 // pred_region
      %1318 = dma.done [#allocation10], 128
    $region55: #{tpu_custom_call.1} parent=1 // pred_fallthru
      _
    %1319 = vsyncpa [#allocation9], 1
    %1320 = vsyncpa [#allocation10], 1
  %1321 = vsyncmov [#allocation7]
  %s1322 = vpop.sfrf %1321
  %p1323 = scmp.eq.s32.totalorder %s1322, 0
  %p1324 = pneg %p1323
  %1326 = shalt.err (%p1324)
  %s1327 = scalar_lea.sflag [#allocation7], 1
  %1328 = vsyncmov %s1327
  %s1329 = vpop.sfrf %1328
  %p1330 = scmp.eq.s32.totalorder %s1329, 0
  %p1331 = pneg %p1330
  %1333 = shalt.err (%p1331)
  %s1334 = scalar_lea.sflag [#allocation7], 2
  %1335 = vsyncmov %s1334
  %s1336 = vpop.sfrf %1335
  %p1337 = scmp.eq.s32.totalorder %s1336, 0
  %p1338 = pneg %p1337
  %1340 = shalt.err (%p1338)
  %s1341 = scalar_lea.sflag [#allocation7], 3
  %1342 = vsyncmov %s1341
  %s1343 = vpop.sfrf %1342
  %p1344 = scmp.eq.s32.totalorder %s1343, 0
  %p1345 = pneg %p1344
  %1347 = shalt.err (%p1345)

</llo_original>
